<compile_context>
chip_gen: v5e
topology: v5e:2x2
jax: 0.10.0
libtpu: 0.0.40
codegen_flags: <defaults>
</compile_context>

<pallas_src>
import math

import jax
import jax.numpy as jnp
from jax.experimental import pallas as pl
from jax.experimental.pallas import tpu as pltpu

PRIOR_LOC = 0.5
PRIOR_STD = 1.0          # torch Normal(0.5, prior_var=1.0): prior_var is used as the scale
_HALF_LOG_2PI = 0.5 * math.log(2.0 * math.pi)
_LOG_PRIOR_STD = math.log(PRIOR_STD)
_INV_PRIOR_STD = 1.0 / PRIOR_STD


def _softplus(x):
    # numerically stable softplus: log1p(exp(-|x|)) + max(x, 0) == log(1 + exp(x))
    return jnp.log1p(jnp.exp(-jnp.abs(x))) + jnp.maximum(x, 0.0)


def fused_bbb_kernel(wmu_ref, wrho_ref, weps_ref, bmu_ref, brho_ref, beps_ref, x_ref,
                     w_ref, b_ref, y_ref, logprior_ref, logpost_ref):
    j = pl.program_id(0)     # OUT-tile index
    k = pl.program_id(1)     # IN-tile index (reduction axis, last in grid)

    # ---- sample weight tile: w = mu + softplus(rho) * eps ----
    wmu = wmu_ref[...]
    weps = weps_ref[...]
    w_sigma = _softplus(wrho_ref[...])
    w = wmu + w_sigma * weps
    w_ref[...] = w

    # ---- sample bias tile (depends only on j; recomputed per k, negligible) ----
    bmu = bmu_ref[...]
    beps = beps_ref[...]
    b_sigma = _softplus(brho_ref[...])
    b = bmu + b_sigma * beps
    b_ref[...] = b

    # ---- log prior / log posterior partial sums (constants folded post-reduction) ----
    # prior: Normal(0.5, PRIOR_STD)      -> -0.5*((w-0.5)/std)^2  (per element)
    # post : Normal(mu, sigma); (w-mu)/sigma == eps exactly -> -0.5*eps^2 - log(sigma)
    n_w = w_ref.shape[0] * w_ref.shape[1]            # static per-tile counts
    n_b = b_ref.shape[1]
    w_prior = -0.5 * jnp.sum(((w - PRIOR_LOC) * _INV_PRIOR_STD) ** 2)
    w_post = jnp.sum(-0.5 * (weps * weps) - jnp.log(w_sigma))
    b_prior = -0.5 * jnp.sum(((b - PRIOR_LOC) * _INV_PRIOR_STD) ** 2)
    b_post = jnp.sum(-0.5 * (beps * beps) - jnp.log(b_sigma))

    first_k = k == 0
    bias_scale = first_k.astype(jnp.float32)         # bias counted once per OUT tile
    prior_add = (w_prior - n_w * (_LOG_PRIOR_STD + _HALF_LOG_2PI)
                 + bias_scale * (b_prior - n_b * (_LOG_PRIOR_STD + _HALF_LOG_2PI)))
    post_add = (w_post - n_w * _HALF_LOG_2PI
                + bias_scale * (b_post - n_b * _HALF_LOG_2PI))

    @pl.when(jnp.logical_and(j == 0, k == 0))
    def _():
        logprior_ref[...] = jnp.zeros_like(logprior_ref)
        logpost_ref[...] = jnp.zeros_like(logpost_ref)

    logprior_ref[...] += prior_add
    logpost_ref[...] += post_add

    # ---- y[:, j-tile]: init with bias at k==0, then accumulate MXU partials ----
    @pl.when(first_k)
    def _():
        y_ref[...] = jnp.broadcast_to(b, y_ref.shape)

    # x @ w.T without materializing the transpose: contract last axes of both.
    y_ref[...] += jax.lax.dot_general(
        x_ref[...], w,
        dimension_numbers=(((1,), (1,)), ((), ())),
        preferred_element_type=jnp.float32)
    # TODO(synk): for large layers on v6e/v7x, cast x/w to bf16 before the dot
    # (keep preferred_element_type=f32) for ~3x MXU throughput.


def _pick_tile(dim, cap):
    """Largest 128-multiple tile <= cap that divides dim, else the full dim."""
    if dim <= cap:
        return dim
    t = (cap // 128) * 128
    while t >= 128:
        if dim % t == 0:
            return t
        t -= 128
    return dim


def linear_bbb_forward(x, w_mu, w_rho, b_mu, b_rho, key,
                       *, tile_out_cap=256, tile_in_cap=512):
    """Fused Linear_BBB forward. Returns (y, w, b, log_prior, log_post)."""
    out_f, in_f = w_mu.shape
    batch = x.shape[0]

    # Host-side eps draws, Normal(0.5, 1), deterministic from `key`.
    # (Kept off-device so the jax.random reference check stays exact; in-kernel
    #  pltpu PRNG would change the random stream.)
    k_w, k_b = jax.random.split(key)
    w_eps = 0.5 + jax.random.normal(k_w, (out_f, in_f), dtype=jnp.float32)
    b_eps = 0.5 + jax.random.normal(k_b, (1, out_f), dtype=jnp.float32)

    b_mu2 = b_mu.reshape(1, out_f)
    b_rho2 = b_rho.reshape(1, out_f)

    # Tile sizes: 128-multiples keep MXU tiles and output stores lane-dense on
    # v5e/v6e/v7x; caps keep double-buffered VMEM demand far under v7x's 32 MiB.
    to = _pick_tile(out_f, tile_out_cap)
    ti = _pick_tile(in_f, tile_in_cap)
    grid = (out_f // to, in_f // ti)

    w_spec = pl.BlockSpec((to, ti), lambda j, k: (j, k))
    bvec_spec = pl.BlockSpec((1, to), lambda j, k: (0, j))
    x_spec = pl.BlockSpec((batch, ti), lambda j, k: (0, k))
    y_spec = pl.BlockSpec((batch, to), lambda j, k: (0, j))
    scalar_spec = pl.BlockSpec((1, 1), lambda j, k: (0, 0))

    w, b, y, log_prior, log_post = pl.pallas_call(
        fused_bbb_kernel,
        grid=grid,
        in_specs=[w_spec, w_spec, w_spec, bvec_spec, bvec_spec, bvec_spec, x_spec],
        out_specs=(w_spec, bvec_spec, y_spec, scalar_spec, scalar_spec),
        out_shape=(
            jax.ShapeDtypeStruct((out_f, in_f), jnp.float32),   # sampled w
            jax.ShapeDtypeStruct((1, out_f), jnp.float32),      # sampled b
            jax.ShapeDtypeStruct((batch, out_f), jnp.float32),  # y
            jax.ShapeDtypeStruct((1, 1), jnp.float32),          # log_prior
            jax.ShapeDtypeStruct((1, 1), jnp.float32),          # log_post
        ),
        compiler_params=pltpu.CompilerParams(
            # both axes feed the resident y / log_prior / log_post accumulators
            dimension_semantics=("arbitrary", "arbitrary")),
    )(w_mu, w_rho, w_eps, b_mu2, b_rho2, b_eps, x)

    return y, w, b.reshape(out_f), log_prior[0, 0], log_post[0, 0]


def _ref_norm_logpdf(v, loc, scale):
    z = (v - loc) / scale
    return -0.5 * z * z - jnp.log(scale) - _HALF_LOG_2PI


if __name__ == "__main__":
    # Small shapes for a Linear_BBB(input_features, output_features); chosen as
    # 128-multiples so the demo exercises a (2, 2) tiled grid.
    batch, in_features, out_features = 8, 512, 256

    key = jax.random.PRNGKey(0)
    kx, kwm, kwr, kbm, kbr, ksample = jax.random.split(key, 6)

    x = jax.random.normal(kx, (batch, in_features), dtype=jnp.float32)
    # Deterministic parameter init (module's __init__ uses zeros; small random
    # values keep the math non-degenerate while staying deterministic).
    w_mu = 0.05 * jax.random.normal(kwm, (out_features, in_features), dtype=jnp.float32)
    w_rho = 0.05 * jax.random.normal(kwr, (out_features, in_features), dtype=jnp.float32)
    b_mu = 0.05 * jax.random.normal(kbm, (out_features,), dtype=jnp.float32)
    b_rho = 0.05 * jax.random.normal(kbr, (out_features,), dtype=jnp.float32)

    y, w, b, log_prior, log_post = linear_bbb_forward(
        x, w_mu, w_rho, b_mu, b_rho, ksample,
        tile_out_cap=128, tile_in_cap=256)   # force a multi-tile grid at demo size
    jax.block_until_ready((y, w, b, log_prior, log_post))

    # ---- pure-JAX reference (same host-side eps draws) ----
    k_w, k_b = jax.random.split(ksample)
    w_eps = 0.5 + jax.random.normal(k_w, (out_features, in_features), dtype=jnp.float32)
    b_eps = 0.5 + jax.random.normal(k_b, (1, out_features), dtype=jnp.float32)
    w_sigma = _softplus(w_rho)
    b_sigma = _softplus(b_rho.reshape(1, -1))
    w_chk = w_mu + w_sigma * w_eps
    b_chk = b_mu.reshape(1, -1) + b_sigma * b_eps
    y_chk = x @ w_chk.T + b_chk
    lp_chk = (jnp.sum(_ref_norm_logpdf(w_chk, PRIOR_LOC, PRIOR_STD))
              + jnp.sum(_ref_norm_logpdf(b_chk, PRIOR_LOC, PRIOR_STD)))
    lq_chk = (jnp.sum(_ref_norm_logpdf(w_chk, w_mu, w_sigma))
              + jnp.sum(_ref_norm_logpdf(b_chk, b_mu.reshape(1, -1), b_sigma)))

    assert jnp.allclose(w, w_chk, atol=1e-5, rtol=1e-5)
    assert jnp.allclose(b, b_chk.reshape(-1), atol=1e-5, rtol=1e-5)
    assert jnp.allclose(y, y_chk, rtol=5e-3, atol=5e-2)
    assert jnp.allclose(log_prior, lp_chk, rtol=1e-4, atol=1.0)
    assert jnp.allclose(log_post, lq_chk, rtol=1e-4, atol=1.0)
    assert jnp.isfinite(log_prior) and jnp.isfinite(log_post)

    print("KERNEL_OK")
</pallas_src>

<mosaic_0001>
module attributes {stable_mosaic.version = 11 : i64} {
  func.func @fused_bbb_kernel(%arg0: i32, %arg1: i32, %arg2: memref<128x256xf32, #tpu.memory_space<vmem>>, %arg3: memref<128x256xf32, #tpu.memory_space<vmem>>, %arg4: memref<128x256xf32, #tpu.memory_space<vmem>>, %arg5: memref<1x128xf32, #tpu.memory_space<vmem>>, %arg6: memref<1x128xf32, #tpu.memory_space<vmem>>, %arg7: memref<1x128xf32, #tpu.memory_space<vmem>>, %arg8: memref<8x256xf32, #tpu.memory_space<vmem>>, %arg9: memref<128x256xf32, #tpu.memory_space<vmem>>, %arg10: memref<1x128xf32, #tpu.memory_space<vmem>>, %arg11: memref<8x128xf32, #tpu.memory_space<vmem>>, %arg12: memref<1x1xf32, #tpu.memory_space<vmem>>, %arg13: memref<1x1xf32, #tpu.memory_space<vmem>>) attributes {dimension_semantics = [#tpu.dimension_semantics<arbitrary>, #tpu.dimension_semantics<arbitrary>], iteration_bounds = array<i64: 2, 2>, scalar_prefetch = 0 : i64, scratch_operands = 0 : i64, tpu.core_type = #tpu.core_type<tc>, window_params = [{transform_indices = @transform_0, window_bounds = array<i64: 128, 256>}, {transform_indices = @transform_1, window_bounds = array<i64: 128, 256>}, {transform_indices = @transform_2, window_bounds = array<i64: 128, 256>}, {transform_indices = @transform_3, window_bounds = array<i64: 1, 128>}, {transform_indices = @transform_4, window_bounds = array<i64: 1, 128>}, {transform_indices = @transform_5, window_bounds = array<i64: 1, 128>}, {transform_indices = @transform_6, window_bounds = array<i64: 8, 256>}, {transform_indices = @transform_7, window_bounds = array<i64: 128, 256>}, {transform_indices = @transform_8, window_bounds = array<i64: 1, 128>}, {transform_indices = @transform_9, window_bounds = array<i64: 8, 128>}, {pipeline_mode = #tpu.pipeline_mode<synchronous>, transform_indices = @transform_10, window_bounds = array<i64: 1, 1>}, {pipeline_mode = #tpu.pipeline_mode<synchronous>, transform_indices = @transform_11, window_bounds = array<i64: 1, 1>}]} {
    %c0 = arith.constant 0 : index
    %c0_0 = arith.constant 0 : index
    %0 = vector.load %arg2[%c0, %c0_0] : memref<128x256xf32, #tpu.memory_space<vmem>>, vector<128x256xf32>
    %c0_1 = arith.constant 0 : index
    %c0_2 = arith.constant 0 : index
    %1 = vector.load %arg4[%c0_1, %c0_2] : memref<128x256xf32, #tpu.memory_space<vmem>>, vector<128x256xf32>
    %c0_3 = arith.constant 0 : index
    %c0_4 = arith.constant 0 : index
    %2 = vector.load %arg3[%c0_3, %c0_4] : memref<128x256xf32, #tpu.memory_space<vmem>>, vector<128x256xf32>
    %3 = math.absf %2 : vector<128x256xf32>
    %cst = arith.constant 0.000000e+00 : f32
    %4 = vector.broadcast %cst : f32 to vector<128x256xf32>
    %5 = arith.subf %4, %3 : vector<128x256xf32>
    %6 = math.exp %5 : vector<128x256xf32>
    %7 = math.log1p %6 : vector<128x256xf32>
    %cst_5 = arith.constant 0.000000e+00 : f32
    %8 = vector.broadcast %cst_5 : f32 to vector<128x256xf32>
    %9 = arith.maximumf %2, %8 : vector<128x256xf32>
    %10 = arith.addf %7, %9 : vector<128x256xf32>
    %11 = arith.mulf %10, %1 : vector<128x256xf32>
    %12 = arith.addf %0, %11 : vector<128x256xf32>
    %c0_6 = arith.constant 0 : index
    %c0_7 = arith.constant 0 : index
    %13 = vector.load %arg9[%c0_6, %c0_7] : memref<128x256xf32, #tpu.memory_space<vmem>>, vector<128x256xf32>
    tpu.vector_store %arg9[%c0_6, %c0_7], %12 {strides = array<i32>} : memref<128x256xf32, #tpu.memory_space<vmem>>, vector<128x256xf32>,
    %c0_8 = arith.constant 0 : index
    %c0_9 = arith.constant 0 : index
    %14 = vector.load %arg5[%c0_8, %c0_9] : memref<1x128xf32, #tpu.memory_space<vmem>>, vector<1x128xf32>
    %c0_10 = arith.constant 0 : index
    %c0_11 = arith.constant 0 : index
    %15 = vector.load %arg7[%c0_10, %c0_11] : memref<1x128xf32, #tpu.memory_space<vmem>>, vector<1x128xf32>
    %c0_12 = arith.constant 0 : index
    %c0_13 = arith.constant 0 : index
    %16 = vector.load %arg6[%c0_12, %c0_13] : memref<1x128xf32, #tpu.memory_space<vmem>>, vector<1x128xf32>
    %17 = math.absf %16 : vector<1x128xf32>
    %cst_14 = arith.constant 0.000000e+00 : f32
    %18 = vector.broadcast %cst_14 : f32 to vector<1x128xf32>
    %19 = arith.subf %18, %17 : vector<1x128xf32>
    %20 = math.exp %19 : vector<1x128xf32>
    %21 = math.log1p %20 : vector<1x128xf32>
    %cst_15 = arith.constant 0.000000e+00 : f32
    %22 = vector.broadcast %cst_15 : f32 to vector<1x128xf32>
    %23 = arith.maximumf %16, %22 : vector<1x128xf32>
    %24 = arith.addf %21, %23 : vector<1x128xf32>
    %25 = arith.mulf %24, %15 : vector<1x128xf32>
    %26 = arith.addf %14, %25 : vector<1x128xf32>
    %c0_16 = arith.constant 0 : index
    %c0_17 = arith.constant 0 : index
    %27 = vector.load %arg10[%c0_16, %c0_17] : memref<1x128xf32, #tpu.memory_space<vmem>>, vector<1x128xf32>
    tpu.vector_store %arg10[%c0_16, %c0_17], %26 {strides = array<i32>} : memref<1x128xf32, #tpu.memory_space<vmem>>, vector<1x128xf32>,
    %cst_18 = arith.constant 5.000000e-01 : f32
    %28 = vector.broadcast %cst_18 : f32 to vector<128x256xf32>
    %29 = arith.subf %12, %28 : vector<128x256xf32>
    %cst_19 = arith.constant 1.000000e+00 : f32
    %30 = vector.broadcast %cst_19 : f32 to vector<128x256xf32>
    %31 = arith.mulf %29, %30 : vector<128x256xf32>
    %32 = arith.mulf %31, %31 : vector<128x256xf32>
    %33 = vector.shape_cast %32 : vector<128x256xf32> to vector<1x128x256xf32>
    %cst_20 = arith.constant dense<0.000000e+00> : vector<1xf32>
    %34 = vector.multi_reduction <add>, %33, %cst_20 [1, 2] : vector<1x128x256xf32> to vector<1xf32>
    %35 = vector.shape_cast %34 : vector<1xf32> to vector<1x1x1xf32>
    %36 = vector.extract %35[0, 0, 0] : f32 from vector<1x1x1xf32>
    %cst_21 = arith.constant -5.000000e-01 : f32
    %37 = arith.mulf %cst_21, %36 : f32
    %38 = arith.mulf %1, %1 : vector<128x256xf32>
    %cst_22 = arith.constant -5.000000e-01 : f32
    %39 = vector.broadcast %cst_22 : f32 to vector<128x256xf32>
    %40 = arith.mulf %39, %38 : vector<128x256xf32>
    %41 = math.log %10 : vector<128x256xf32>
    %42 = arith.subf %40, %41 : vector<128x256xf32>
    %43 = vector.shape_cast %42 : vector<128x256xf32> to vector<1x128x256xf32>
    %cst_23 = arith.constant dense<0.000000e+00> : vector<1xf32>
    %44 = vector.multi_reduction <add>, %43, %cst_23 [1, 2] : vector<1x128x256xf32> to vector<1xf32>
    %45 = vector.shape_cast %44 : vector<1xf32> to vector<1x1x1xf32>
    %46 = vector.extract %45[0, 0, 0] : f32 from vector<1x1x1xf32>
    %cst_24 = arith.constant 5.000000e-01 : f32
    %47 = vector.broadcast %cst_24 : f32 to vector<1x128xf32>
    %48 = arith.subf %26, %47 : vector<1x128xf32>
    %cst_25 = arith.constant 1.000000e+00 : f32
    %49 = vector.broadcast %cst_25 : f32 to vector<1x128xf32>
    %50 = arith.mulf %48, %49 : vector<1x128xf32>
    %51 = arith.mulf %50, %50 : vector<1x128xf32>
    %52 = vector.shape_cast %51 : vector<1x128xf32> to vector<1x1x128xf32>
    %cst_26 = arith.constant dense<0.000000e+00> : vector<1xf32>
    %53 = vector.multi_reduction <add>, %52, %cst_26 [1, 2] : vector<1x1x128xf32> to vector<1xf32>
    %54 = vector.shape_cast %53 : vector<1xf32> to vector<1x1x1xf32>
    %55 = vector.extract %54[0, 0, 0] : f32 from vector<1x1x1xf32>
    %cst_27 = arith.constant -5.000000e-01 : f32
    %56 = arith.mulf %cst_27, %55 : f32
    %57 = arith.mulf %15, %15 : vector<1x128xf32>
    %cst_28 = arith.constant -5.000000e-01 : f32
    %58 = vector.broadcast %cst_28 : f32 to vector<1x128xf32>
    %59 = arith.mulf %58, %57 : vector<1x128xf32>
    %60 = math.log %24 : vector<1x128xf32>
    %61 = arith.subf %59, %60 : vector<1x128xf32>
    %62 = vector.shape_cast %61 : vector<1x128xf32> to vector<1x1x128xf32>
    %cst_29 = arith.constant dense<0.000000e+00> : vector<1xf32>
    %63 = vector.multi_reduction <add>, %62, %cst_29 [1, 2] : vector<1x1x128xf32> to vector<1xf32>
    %64 = vector.shape_cast %63 : vector<1xf32> to vector<1x1x1xf32>
    %65 = vector.extract %64[0, 0, 0] : f32 from vector<1x1x1xf32>
    %c0_i32 = arith.constant 0 : i32
    %66 = arith.cmpi eq, %arg1, %c0_i32 : i32
    %67 = arith.extui %66 : i1 to i32
    %68 = arith.sitofp %67 : i32 to f32
    %cst_30 = arith.constant 30111.7773 : f32
    %69 = arith.subf %37, %cst_30 : f32
    %cst_31 = arith.constant 117.62413 : f32
    %70 = arith.subf %56, %cst_31 : f32
    %71 = arith.mulf %68, %70 : f32
    %72 = arith.addf %69, %71 : f32
    %cst_32 = arith.constant 30111.7773 : f32
    %73 = arith.subf %46, %cst_32 : f32
    %cst_33 = arith.constant 117.62413 : f32
    %74 = arith.subf %65, %cst_33 : f32
    %75 = arith.mulf %68, %74 : f32
    %76 = arith.addf %73, %75 : f32
    %c0_i32_34 = arith.constant 0 : i32
    %77 = arith.cmpi eq, %arg0, %c0_i32_34 : i32
    %c0_i32_35 = arith.constant 0 : i32
    %78 = arith.cmpi eq, %arg1, %c0_i32_35 : i32
    %79 = arith.andi %77, %78 : i1
    %80 = arith.extui %79 : i1 to i32
    %c0_i32_36 = arith.constant 0 : i32
    %81 = arith.cmpi ne, %80, %c0_i32_36 : i32
    scf.if %81 {
      %cst_53 = arith.constant 0.000000e+00 : f32
      %97 = vector.broadcast %cst_53 : f32 to vector<1x1xf32>
      %c0_54 = arith.constant 0 : index
      %c0_55 = arith.constant 0 : index
      %98 = vector.load %arg12[%c0_54, %c0_55] : memref<1x1xf32, #tpu.memory_space<vmem>>, vector<1x1xf32>
      tpu.vector_store %arg12[%c0_54, %c0_55], %97 {strides = array<i32>} : memref<1x1xf32, #tpu.memory_space<vmem>>, vector<1x1xf32>,
      %cst_56 = arith.constant 0.000000e+00 : f32
      %99 = vector.broadcast %cst_56 : f32 to vector<1x1xf32>
      %c0_57 = arith.constant 0 : index
      %c0_58 = arith.constant 0 : index
      %100 = vector.load %arg13[%c0_57, %c0_58] : memref<1x1xf32, #tpu.memory_space<vmem>>, vector<1x1xf32>
      tpu.vector_store %arg13[%c0_57, %c0_58], %99 {strides = array<i32>} : memref<1x1xf32, #tpu.memory_space<vmem>>, vector<1x1xf32>,
    } else {
    }
    %c0_37 = arith.constant 0 : index
    %c0_38 = arith.constant 0 : index
    %82 = vector.load %arg12[%c0_37, %c0_38] : memref<1x1xf32, #tpu.memory_space<vmem>>, vector<1x1xf32>
    %83 = vector.broadcast %72 : f32 to vector<1x1xf32>
    %84 = arith.addf %82, %83 : vector<1x1xf32>
    %c0_39 = arith.constant 0 : index
    %c0_40 = arith.constant 0 : index
    %85 = vector.load %arg12[%c0_39, %c0_40] : memref<1x1xf32, #tpu.memory_space<vmem>>, vector<1x1xf32>
    tpu.vector_store %arg12[%c0_39, %c0_40], %84 {strides = array<i32>} : memref<1x1xf32, #tpu.memory_space<vmem>>, vector<1x1xf32>,
    %c0_41 = arith.constant 0 : index
    %c0_42 = arith.constant 0 : index
    %86 = vector.load %arg13[%c0_41, %c0_42] : memref<1x1xf32, #tpu.memory_space<vmem>>, vector<1x1xf32>
    %87 = vector.broadcast %76 : f32 to vector<1x1xf32>
    %88 = arith.addf %86, %87 : vector<1x1xf32>
    %c0_43 = arith.constant 0 : index
    %c0_44 = arith.constant 0 : index
    %89 = vector.load %arg13[%c0_43, %c0_44] : memref<1x1xf32, #tpu.memory_space<vmem>>, vector<1x1xf32>
    tpu.vector_store %arg13[%c0_43, %c0_44], %88 {strides = array<i32>} : memref<1x1xf32, #tpu.memory_space<vmem>>, vector<1x1xf32>,
    %90 = arith.extui %66 : i1 to i32
    %c0_i32_45 = arith.constant 0 : i32
    %91 = arith.cmpi ne, %90, %c0_i32_45 : i32
    scf.if %91 {
      %97 = vector.shape_cast %26 : vector<1x128xf32> to vector<1x128xf32>
      %98 = vector.broadcast %97 : vector<1x128xf32> to vector<8x128xf32>
      %c0_53 = arith.constant 0 : index
      %c0_54 = arith.constant 0 : index
      %99 = vector.load %arg11[%c0_53, %c0_54] : memref<8x128xf32, #tpu.memory_space<vmem>>, vector<8x128xf32>
      tpu.vector_store %arg11[%c0_53, %c0_54], %98 {strides = array<i32>} : memref<8x128xf32, #tpu.memory_space<vmem>>, vector<8x128xf32>,
    } else {
    }
    %c0_46 = arith.constant 0 : index
    %c0_47 = arith.constant 0 : index
    %92 = vector.load %arg11[%c0_46, %c0_47] : memref<8x128xf32, #tpu.memory_space<vmem>>, vector<8x128xf32>
    %c0_48 = arith.constant 0 : index
    %c0_49 = arith.constant 0 : index
    %93 = vector.load %arg8[%c0_48, %c0_49] : memref<8x256xf32, #tpu.memory_space<vmem>>, vector<8x256xf32>
    %cst_50 = arith.constant dense<0.000000e+00> : vector<8x128xf32>
    %94 = tpu.matmul %93, %12, %cst_50 {dimension_numbers = #tpu.dot_dimension_numbers<[1], [1], [0], [0], [0, 0, 1, 0], [], []>} : vector<8x256xf32>, vector<128x256xf32>, vector<8x128xf32> -> vector<8x128xf32>
    %95 = arith.addf %92, %94 : vector<8x128xf32>
    %c0_51 = arith.constant 0 : index
    %c0_52 = arith.constant 0 : index
    %96 = vector.load %arg11[%c0_51, %c0_52] : memref<8x128xf32, #tpu.memory_space<vmem>>, vector<8x128xf32>
    tpu.vector_store %arg11[%c0_51, %c0_52], %95 {strides = array<i32>} : memref<8x128xf32, #tpu.memory_space<vmem>>, vector<8x128xf32>,
    return
  }
  func.func @transform_0(%arg0: i32, %arg1: i32) -> (i32, i32) {
    %c0_i32 = arith.constant 0 : i32
    return %arg0, %arg1 : i32, i32
  }
  func.func @transform_1(%arg0: i32, %arg1: i32) -> (i32, i32) {
    %c0_i32 = arith.constant 0 : i32
    return %arg0, %arg1 : i32, i32
  }
  func.func @transform_2(%arg0: i32, %arg1: i32) -> (i32, i32) {
    %c0_i32 = arith.constant 0 : i32
    return %arg0, %arg1 : i32, i32
  }
  func.func @transform_3(%arg0: i32, %arg1: i32) -> (i32, i32) {
    %c0_i32 = arith.constant 0 : i32
    %c0_i32_0 = arith.constant 0 : i32
    return %c0_i32, %arg0 : i32, i32
  }
  func.func @transform_4(%arg0: i32, %arg1: i32) -> (i32, i32) {
    %c0_i32 = arith.constant 0 : i32
    %c0_i32_0 = arith.constant 0 : i32
    return %c0_i32, %arg0 : i32, i32
  }
  func.func @transform_5(%arg0: i32, %arg1: i32) -> (i32, i32) {
    %c0_i32 = arith.constant 0 : i32
    %c0_i32_0 = arith.constant 0 : i32
    return %c0_i32, %arg0 : i32, i32
  }
  func.func @transform_6(%arg0: i32, %arg1: i32) -> (i32, i32) {
    %c0_i32 = arith.constant 0 : i32
    %c0_i32_0 = arith.constant 0 : i32
    return %c0_i32, %arg1 : i32, i32
  }
  func.func @transform_7(%arg0: i32, %arg1: i32) -> (i32, i32) {
    %c0_i32 = arith.constant 0 : i32
    return %arg0, %arg1 : i32, i32
  }
  func.func @transform_8(%arg0: i32, %arg1: i32) -> (i32, i32) {
    %c0_i32 = arith.constant 0 : i32
    %c0_i32_0 = arith.constant 0 : i32
    return %c0_i32, %arg0 : i32, i32
  }
  func.func @transform_9(%arg0: i32, %arg1: i32) -> (i32, i32) {
    %c0_i32 = arith.constant 0 : i32
    %c0_i32_0 = arith.constant 0 : i32
    return %c0_i32, %arg0 : i32, i32
  }
  func.func @transform_10(%arg0: i32, %arg1: i32) -> (i32, i32) {
    %c0_i32 = arith.constant 0 : i32
    %c0_i32_0 = arith.constant 0 : i32
    %c0_i32_1 = arith.constant 0 : i32
    return %c0_i32, %c0_i32_0 : i32, i32
  }
  func.func @transform_11(%arg0: i32, %arg1: i32) -> (i32, i32) {
    %c0_i32 = arith.constant 0 : i32
    %c0_i32_0 = arith.constant 0 : i32
    %c0_i32_1 = arith.constant 0 : i32
    return %c0_i32, %c0_i32_0 : i32, i32
  }
}

</mosaic_0001>

<llo_original>
// kernel: tpu_custom_call.1
$region0: #{tpu_custom_call.1}
  #allocation0 [shape = 'u32[]', space=smem, size = 0x4, offset = 0x4, fixed_abs, tag = 'smem constant byte address 0x4 - core index']
  #allocation1 [shape = 'u32[72,128]{1,0:T(1,128)}', space=vmem, size = 0x9000, scoped, tag = 'internal scratch']
  %s0 = inlined_call_operand.hbm [shape: f32[256,512], index: 0, kind: input, shape index: {}]
  %s1 = inlined_call_operand.hbm [shape: f32[256,512], index: 1, kind: input, shape index: {}]
  %s2 = inlined_call_operand.hbm [shape: f32[256,512], index: 2, kind: input, shape index: {}]
  %s3 = inlined_call_operand.vmem [shape: f32[1,256], index: 3, kind: input, shape index: {}]
  %s4 = inlined_call_operand.hbm [shape: f32[1,256], index: 4, kind: input, shape index: {}]
  %s5 = inlined_call_operand.vmem [shape: f32[1,256], index: 5, kind: input, shape index: {}]
  %s6 = inlined_call_operand.hbm [shape: f32[8,512], index: 6, kind: input, shape index: {}]
  %s7 = inlined_call_operand.hbm [shape: f32[256,512], index: 7, kind: output, shape index: {0}]
  %s8 = inlined_call_operand.hbm [shape: f32[1,256], index: 8, kind: output, shape index: {1}]
  %s9 = inlined_call_operand.hbm [shape: f32[8,256], index: 9, kind: output, shape index: {2}]
  %s10 = inlined_call_operand.hbm [shape: f32[1,1], index: 10, kind: output, shape index: {3}]
  %s11 = inlined_call_operand.hbm [shape: f32[1,1], index: 11, kind: output, shape index: {4}]
  %12 = xla_tuple %s7, %s8, %s9, %s10, %s11
  %s13 = sld [smem:[#allocation0]]
  $region121: #{tpu_custom_call.1} parent=0
    _
  %s15 = ssub.s32 1, %s13
  %s16 = scalar_select 0, %s15, %s13
  $region1: #{tpu_custom_call.1} parent=0
    #allocation2 [shape = 'u8[262144]{0}', space=vmem, size = 0x40000, scoped, tag = 'input window, operand 0']
    #allocation3 [shape = 's32[2]{0}', space=sflag, size = 0x8, scoped, tag = 'scoped memory for tpu_custom_call.1']
    #allocation4 [shape = 's32[2]{0}', space=sflag, size = 0x8, scoped, tag = 'scoped memory for tpu_custom_call.1']
    #allocation5 [shape = 'u8[262144]{0}', space=vmem, size = 0x40000, scoped, tag = 'input window, operand 1']
    #allocation6 [shape = 's32[2]{0}', space=sflag, size = 0x8, scoped, tag = 'scoped memory for tpu_custom_call.1']
    #allocation7 [shape = 'u8[262144]{0}', space=vmem, size = 0x40000, scoped, tag = 'input window, operand 2']
    #allocation8 [shape = 'u8[1024]{0}', space=vmem, size = 0x400, scoped, tag = 'input window, operand 4']
    #allocation9 [shape = 's32[2]{0}', space=sflag, size = 0x8, scoped, tag = 'scoped memory for tpu_custom_call.1']
    #allocation10 [shape = 'u8[16384]{0}', space=vmem, size = 0x4000, scoped, tag = 'input window, operand 6']
    #allocation11 [shape = 'u8[262144]{0}', space=vmem, size = 0x40000, scoped, tag = 'output window, operand 0']
    #allocation12 [shape = 'u8[1024]{0}', space=vmem, size = 0x400, scoped, tag = 'output window, operand 1']
    #allocation13 [shape = 's32[2]{0}', space=sflag, size = 0x8, scoped, tag = 'scoped memory for tpu_custom_call.1']
    #allocation14 [shape = 'u8[8192]{0}', space=vmem, size = 0x2000, scoped, tag = 'output window, operand 2']
    #allocation15 [shape = 'u8[512]{0}', space=vmem, size = 0x400, scoped, tag = 'output window, operand 3, single buffered']
    #allocation16 [shape = 's32[1]{0}', space=sflag, size = 0x4, scoped, tag = 'scoped memory for tpu_custom_call.1']
    #allocation17 [shape = 'u8[512]{0}', space=vmem, size = 0x400, scoped, tag = 'output window, operand 4, single buffered']
    %17 = vsyncpa [#allocation3], 0
    %s18 = scalar_lea.sflag [#allocation3], 1
    %19 = vsyncpa %s18, 0
    %20 = vsyncpa [#allocation6], 0
    %s21 = scalar_lea.sflag [#allocation6], 1
    %22 = vsyncpa %s21, 0
    %23 = vsyncpa [#allocation9], 0
    %s24 = scalar_lea.sflag [#allocation9], 1
    %25 = vsyncpa %s24, 0
    %26 = vsyncpa [#allocation4], 0
    %s27 = scalar_lea.sflag [#allocation4], 1
    %28 = vsyncpa %s27, 0
    %29 = vsyncpa [#allocation13], 0
    %s30 = scalar_lea.sflag [#allocation13], 1
    %31 = vsyncpa %s30, 0
    %32 = vsyncpa [#allocation16], 0
    loop: start=0, step=1, limit=6
    $region2: #{tpu_custom_call.1} parent=1 // loop_pre_header
      _
    $region3: #{tpu_custom_call.1} parent=1 // loop_header
      %s34 = sphi 0, %s38
      %p35 = scmp.ge.s32.totalorder %s34, 6
      %s41 = sphi 0, %s53
      %s42 = sphi 0, %s49
      %s43 = sphi 0, %s41
      %s44 = sphi 0, %s42
      %s45 = sphi 0, %s43
      %s46 = sphi 0, %s44
      %s58 = sphi 0, %s60
      %s61 = sphi 0, %s58
      %s62 = sphi 0, %s61
      %s78 = sphi 0, %s62
      %s86 = sphi 0, %s88
      %s89 = sphi 0, %s86
      %s90 = sphi 0, %s89
      %s106 = sphi 0, %s90
      %s114 = sphi 0, %s116
      %s117 = sphi 0, %s114
      %s118 = sphi 0, %s117
      %s134 = sphi 0, %s118
      %s140 = sphi 0, %s142
      %s143 = sphi 0, %s140
      %s144 = sphi 0, %s143
      %s160 = sphi 0, %s144
      %s166 = sphi 0, %s168
      %s169 = sphi 0, %s166
      %s170 = sphi 0, %s169
      %s186 = sphi 0, %s170
      %s192 = sphi 0, %s194
      %s195 = sphi 0, %s192
      %s196 = sphi 0, %s195
      %s212 = sphi 0, %s196
      %s218 = sphi 0, %s220
      %s221 = sphi 0, %s218
      %s222 = sphi 0, %s221
      %s238 = sphi 0, %s222
      %s246 = sphi 0, %s248
      %s249 = sphi 0, %s246
      %s250 = sphi 0, %s249
      %s266 = sphi 0, %s250
      %s272 = sphi 0, %s274
      %s275 = sphi 0, %s272
      %s276 = sphi 0, %s275
      %s292 = sphi 0, %s276
      %s298 = sphi 0, %s300
      %s301 = sphi 0, %s298
      %s302 = sphi 0, %s301
      %s318 = sphi 0, %s302
      %s322 = sphi 0, %s322
      %s324 = sphi 0, %s322
      %s325 = sphi 0, %s324
      %s339 = sphi 0, %s325
      %s343 = sphi 0, %s343
      %s345 = sphi 0, %s343
      %s346 = sphi 0, %s345
      %s360 = sphi 0, %s346
    $region4: #{tpu_custom_call.1} parent=1 // loop_header_branch
      %37 = sbr.rel (%p35) target = $region8
    $region5: #{tpu_custom_call.1} parent=1 // loop_body
      %s39 = ssub.s32 %s34, 1
      %s40 = ssub.s32 %s34, 2
      %s47 = sadd.s32 1, %s42
      %p48 = scmp.ge.s32.totalorder %s47, 2
      %s49 = scalar_select %p48, 0, %s47
      %s50 = sadd.s32 1, %s41
      %s51 = scalar_select %p48, %s50, %s41
      %p52 = scmp.ge.s32.totalorder %s51, 2
      %s53 = scalar_select %p52, 0, %s51
      %s54 = ssub.s32 %s41, %s53
      %s55 = ssub.s32 %s42, %s49
      %s56 = sor.u32 %s54, %s55
      %p57 = scmp.eq.s32.totalorder %s56, 0
      %s59 = sadd.s32 %s58, 1
      %s60 = scalar_select %p57, %s58, %s59
      %p63 = pneg %p57
      %p64 = scmp.eq.s32.totalorder %s34, 3
      %p65 = por %p63, %p64
      %p66 = scmp.ne.s32.totalorder %s58, %s61
      %p67 = scmp.eq.s32.totalorder %s34, 0
      %p68 = por %p66, %p67
      %p69 = scmp.ne.s32.totalorder %s58, %s61
      %p70 = scmp.eq.s32.totalorder %s39, 3
      %p71 = por %p69, %p70
      %p72 = scmp.ne.s32.totalorder %s61, %s62
      %p73 = scmp.eq.s32.totalorder %s39, 0
      %p74 = por %p72, %p73
      %p75 = scmp.ne.s32.totalorder %s61, %s62
      %p76 = scmp.eq.s32.totalorder %s40, 3
      %p77 = por %p75, %p76
      %p79 = scmp.ne.s32.totalorder %s62, %s78
      %p80 = scmp.eq.s32.totalorder %s40, 0
      %p81 = por %p79, %p80
      %s82 = ssub.s32 %s41, %s53
      %s83 = ssub.s32 %s42, %s49
      %s84 = sor.u32 %s82, %s83
      %p85 = scmp.eq.s32.totalorder %s84, 0
      %s87 = sadd.s32 %s86, 1
      %s88 = scalar_select %p85, %s86, %s87
      %p91 = pneg %p85
      %p92 = scmp.eq.s32.totalorder %s34, 3
      %p93 = por %p91, %p92
      %p94 = scmp.ne.s32.totalorder %s86, %s89
      %p95 = scmp.eq.s32.totalorder %s34, 0
      %p96 = por %p94, %p95
      %p97 = scmp.ne.s32.totalorder %s86, %s89
      %p98 = scmp.eq.s32.totalorder %s39, 3
      %p99 = por %p97, %p98
      %p100 = scmp.ne.s32.totalorder %s89, %s90
      %p101 = scmp.eq.s32.totalorder %s39, 0
      %p102 = por %p100, %p101
      %p103 = scmp.ne.s32.totalorder %s89, %s90
      %p104 = scmp.eq.s32.totalorder %s40, 3
      %p105 = por %p103, %p104
      %p107 = scmp.ne.s32.totalorder %s90, %s106
      %p108 = scmp.eq.s32.totalorder %s40, 0
      %p109 = por %p107, %p108
      %s110 = ssub.s32 %s41, %s53
      %s111 = ssub.s32 %s42, %s49
      %s112 = sor.u32 %s110, %s111
      %p113 = scmp.eq.s32.totalorder %s112, 0
      %s115 = sadd.s32 %s114, 1
      %s116 = scalar_select %p113, %s114, %s115
      %p119 = pneg %p113
      %p120 = scmp.eq.s32.totalorder %s34, 3
      %p121 = por %p119, %p120
      %p122 = scmp.ne.s32.totalorder %s114, %s117
      %p123 = scmp.eq.s32.totalorder %s34, 0
      %p124 = por %p122, %p123
      %p125 = scmp.ne.s32.totalorder %s114, %s117
      %p126 = scmp.eq.s32.totalorder %s39, 3
      %p127 = por %p125, %p126
      %p128 = scmp.ne.s32.totalorder %s117, %s118
      %p129 = scmp.eq.s32.totalorder %s39, 0
      %p130 = por %p128, %p129
      %p131 = scmp.ne.s32.totalorder %s117, %s118
      %p132 = scmp.eq.s32.totalorder %s40, 3
      %p133 = por %p131, %p132
      %p135 = scmp.ne.s32.totalorder %s118, %s134
      %p136 = scmp.eq.s32.totalorder %s40, 0
      %p137 = por %p135, %p136
      %s138 = ssub.s32 %s41, %s53
      %p139 = scmp.eq.s32.totalorder %s138, 0
      %s141 = sadd.s32 %s140, 1
      %s142 = scalar_select %p139, %s140, %s141
      %p145 = pneg %p139
      %p146 = scmp.eq.s32.totalorder %s34, 3
      %p147 = por %p145, %p146
      %p148 = scmp.ne.s32.totalorder %s140, %s143
      %p149 = scmp.eq.s32.totalorder %s34, 0
      %p150 = por %p148, %p149
      %p151 = scmp.ne.s32.totalorder %s140, %s143
      %p152 = scmp.eq.s32.totalorder %s39, 3
      %p153 = por %p151, %p152
      %p154 = scmp.ne.s32.totalorder %s143, %s144
      %p155 = scmp.eq.s32.totalorder %s39, 0
      %p156 = por %p154, %p155
      %p157 = scmp.ne.s32.totalorder %s143, %s144
      %p158 = scmp.eq.s32.totalorder %s40, 3
      %p159 = por %p157, %p158
      %p161 = scmp.ne.s32.totalorder %s144, %s160
      %p162 = scmp.eq.s32.totalorder %s40, 0
      %p163 = por %p161, %p162
      %s164 = ssub.s32 %s41, %s53
      %p165 = scmp.eq.s32.totalorder %s164, 0
      %s167 = sadd.s32 %s166, 1
      %s168 = scalar_select %p165, %s166, %s167
      %p171 = pneg %p165
      %p172 = scmp.eq.s32.totalorder %s34, 3
      %p173 = por %p171, %p172
      %p174 = scmp.ne.s32.totalorder %s166, %s169
      %p175 = scmp.eq.s32.totalorder %s34, 0
      %p176 = por %p174, %p175
      %p177 = scmp.ne.s32.totalorder %s166, %s169
      %p178 = scmp.eq.s32.totalorder %s39, 3
      %p179 = por %p177, %p178
      %p180 = scmp.ne.s32.totalorder %s169, %s170
      %p181 = scmp.eq.s32.totalorder %s39, 0
      %p182 = por %p180, %p181
      %p183 = scmp.ne.s32.totalorder %s169, %s170
      %p184 = scmp.eq.s32.totalorder %s40, 3
      %p185 = por %p183, %p184
      %p187 = scmp.ne.s32.totalorder %s170, %s186
      %p188 = scmp.eq.s32.totalorder %s40, 0
      %p189 = por %p187, %p188
      %s190 = ssub.s32 %s41, %s53
      %p191 = scmp.eq.s32.totalorder %s190, 0
      %s193 = sadd.s32 %s192, 1
      %s194 = scalar_select %p191, %s192, %s193
      %p197 = pneg %p191
      %p198 = scmp.eq.s32.totalorder %s34, 3
      %p199 = por %p197, %p198
      %p200 = scmp.ne.s32.totalorder %s192, %s195
      %p201 = scmp.eq.s32.totalorder %s34, 0
      %p202 = por %p200, %p201
      %p203 = scmp.ne.s32.totalorder %s192, %s195
      %p204 = scmp.eq.s32.totalorder %s39, 3
      %p205 = por %p203, %p204
      %p206 = scmp.ne.s32.totalorder %s195, %s196
      %p207 = scmp.eq.s32.totalorder %s39, 0
      %p208 = por %p206, %p207
      %p209 = scmp.ne.s32.totalorder %s195, %s196
      %p210 = scmp.eq.s32.totalorder %s40, 3
      %p211 = por %p209, %p210
      %p213 = scmp.ne.s32.totalorder %s196, %s212
      %p214 = scmp.eq.s32.totalorder %s40, 0
      %p215 = por %p213, %p214
      %s216 = ssub.s32 %s42, %s49
      %p217 = scmp.eq.s32.totalorder %s216, 0
      %s219 = sadd.s32 %s218, 1
      %s220 = scalar_select %p217, %s218, %s219
      %p223 = pneg %p217
      %p224 = scmp.eq.s32.totalorder %s34, 3
      %p225 = por %p223, %p224
      %p226 = scmp.ne.s32.totalorder %s218, %s221
      %p227 = scmp.eq.s32.totalorder %s34, 0
      %p228 = por %p226, %p227
      %p229 = scmp.ne.s32.totalorder %s218, %s221
      %p230 = scmp.eq.s32.totalorder %s39, 3
      %p231 = por %p229, %p230
      %p232 = scmp.ne.s32.totalorder %s221, %s222
      %p233 = scmp.eq.s32.totalorder %s39, 0
      %p234 = por %p232, %p233
      %p235 = scmp.ne.s32.totalorder %s221, %s222
      %p236 = scmp.eq.s32.totalorder %s40, 3
      %p237 = por %p235, %p236
      %p239 = scmp.ne.s32.totalorder %s222, %s238
      %p240 = scmp.eq.s32.totalorder %s40, 0
      %p241 = por %p239, %p240
      %s242 = ssub.s32 %s41, %s53
      %s243 = ssub.s32 %s42, %s49
      %s244 = sor.u32 %s242, %s243
      %p245 = scmp.eq.s32.totalorder %s244, 0
      %s247 = sadd.s32 %s246, 1
      %s248 = scalar_select %p245, %s246, %s247
      %p251 = pneg %p245
      %p252 = scmp.eq.s32.totalorder %s34, 3
      %p253 = por %p251, %p252
      %p254 = scmp.ne.s32.totalorder %s246, %s249
      %p255 = scmp.eq.s32.totalorder %s34, 0
      %p256 = por %p254, %p255
      %p257 = scmp.ne.s32.totalorder %s246, %s249
      %p258 = scmp.eq.s32.totalorder %s39, 3
      %p259 = por %p257, %p258
      %p260 = scmp.ne.s32.totalorder %s249, %s250
      %p261 = scmp.eq.s32.totalorder %s39, 0
      %p262 = por %p260, %p261
      %p263 = scmp.ne.s32.totalorder %s249, %s250
      %p264 = scmp.eq.s32.totalorder %s40, 3
      %p265 = por %p263, %p264
      %p267 = scmp.ne.s32.totalorder %s250, %s266
      %p268 = scmp.eq.s32.totalorder %s40, 0
      %p269 = por %p267, %p268
      %s270 = ssub.s32 %s41, %s53
      %p271 = scmp.eq.s32.totalorder %s270, 0
      %s273 = sadd.s32 %s272, 1
      %s274 = scalar_select %p271, %s272, %s273
      %p277 = pneg %p271
      %p278 = scmp.eq.s32.totalorder %s34, 3
      %p279 = por %p277, %p278
      %p280 = scmp.ne.s32.totalorder %s272, %s275
      %p281 = scmp.eq.s32.totalorder %s34, 0
      %p282 = por %p280, %p281
      %p283 = scmp.ne.s32.totalorder %s272, %s275
      %p284 = scmp.eq.s32.totalorder %s39, 3
      %p285 = por %p283, %p284
      %p286 = scmp.ne.s32.totalorder %s275, %s276
      %p287 = scmp.eq.s32.totalorder %s39, 0
      %p288 = por %p286, %p287
      %p289 = scmp.ne.s32.totalorder %s275, %s276
      %p290 = scmp.eq.s32.totalorder %s40, 3
      %p291 = por %p289, %p290
      %p293 = scmp.ne.s32.totalorder %s276, %s292
      %p294 = scmp.eq.s32.totalorder %s40, 0
      %p295 = por %p293, %p294
      %s296 = ssub.s32 %s41, %s53
      %p297 = scmp.eq.s32.totalorder %s296, 0
      %s299 = sadd.s32 %s298, 1
      %s300 = scalar_select %p297, %s298, %s299
      %p303 = pneg %p297
      %p304 = scmp.eq.s32.totalorder %s34, 3
      %p305 = por %p303, %p304
      %p306 = scmp.ne.s32.totalorder %s298, %s301
      %p307 = scmp.eq.s32.totalorder %s34, 0
      %p308 = por %p306, %p307
      %p309 = scmp.ne.s32.totalorder %s298, %s301
      %p310 = scmp.eq.s32.totalorder %s39, 3
      %p311 = por %p309, %p310
      %p312 = scmp.ne.s32.totalorder %s301, %s302
      %p313 = scmp.eq.s32.totalorder %s39, 0
      %p314 = por %p312, %p313
      %p315 = scmp.ne.s32.totalorder %s301, %s302
      %p316 = scmp.eq.s32.totalorder %s40, 3
      %p317 = por %p315, %p316
      %p319 = scmp.ne.s32.totalorder %s302, %s318
      %p320 = scmp.eq.s32.totalorder %s40, 0
      %p321 = por %p319, %p320
      %s323 = sadd.s32 %s322, 1
      %p326 = scmp.eq.s32.totalorder %s34, 3
      %p327 = scmp.ne.s32.totalorder %s322, %s324
      %p328 = scmp.eq.s32.totalorder %s34, 0
      %p329 = por %p327, %p328
      %p330 = scmp.ne.s32.totalorder %s322, %s324
      %p331 = scmp.eq.s32.totalorder %s39, 3
      %p332 = por %p330, %p331
      %p333 = scmp.ne.s32.totalorder %s324, %s325
      %p334 = scmp.eq.s32.totalorder %s39, 0
      %p335 = por %p333, %p334
      %p336 = scmp.ne.s32.totalorder %s324, %s325
      %p337 = scmp.eq.s32.totalorder %s40, 3
      %p338 = por %p336, %p337
      %p340 = scmp.ne.s32.totalorder %s325, %s339
      %p341 = scmp.eq.s32.totalorder %s40, 0
      %p342 = por %p340, %p341
      %s344 = sadd.s32 %s343, 1
      %p347 = scmp.eq.s32.totalorder %s34, 3
      %p348 = scmp.ne.s32.totalorder %s343, %s345
      %p349 = scmp.eq.s32.totalorder %s34, 0
      %p350 = por %p348, %p349
      %p351 = scmp.ne.s32.totalorder %s343, %s345
      %p352 = scmp.eq.s32.totalorder %s39, 3
      %p353 = por %p351, %p352
      %p354 = scmp.ne.s32.totalorder %s345, %s346
      %p355 = scmp.eq.s32.totalorder %s39, 0
      %p356 = por %p354, %p355
      %p357 = scmp.ne.s32.totalorder %s345, %s346
      %p358 = scmp.eq.s32.totalorder %s40, 3
      %p359 = por %p357, %p358
      %p361 = scmp.ne.s32.totalorder %s346, %s360
      %p362 = scmp.eq.s32.totalorder %s40, 0
      %p363 = por %p361, %p362
      %p364 = scmp.le.s32.totalorder 1, %s34
      %p365 = scmp.lt.s32.totalorder %s34, 5
      %p366 = pnand %p364, %p365
      %p367 = pneg %p366
      // Predicated region
      $region9: #{tpu_custom_call.1} parent=5 // pred_check
        _
      $region10: #{tpu_custom_call.1} parent=5 // pred_check_branch
        %369 = sbr.rel (%p366) target = $region12
      $region11: #{tpu_custom_call.1} parent=5 // pred_region
        %s370 = ssub.s32 %s34, 1
      $region12: #{tpu_custom_call.1} parent=5 // pred_fallthru
        _
      %p371 = scmp.lt.s32.totalorder %s34, 4
      // Predicated region
      $region13: #{tpu_custom_call.1} parent=5 // pred_check
        %p372 = pneg %p371
      $region14: #{tpu_custom_call.1} parent=5 // pred_check_branch
        %374 = sbr.rel (%p372) target = $region16
      $region15: #{tpu_custom_call.1} parent=5 // pred_region
        // Predicated region
        $region17: #{tpu_custom_call.1} parent=15 // pred_check
          %p375 = pneg %p68
        $region18: #{tpu_custom_call.1} parent=15 // pred_check_branch
          %377 = sbr.rel (%p375) target = $region20
        $region19: #{tpu_custom_call.1} parent=15 // pred_region
          %s378 = sand.u32 %s58, 1
          %s379 = scalar_lea.sflag [#allocation3], %s378
          %s380 = sand.u32 %s58, 1
          %s381 = smul.addr %s380, 256
          %s382 = scalar_lea.vmem [#allocation2], %s381
          %s383 = smul.u32 16, %s41
          %s384 = smul.u32 2, %s42
          %386 = vsyncadd %s379, 0
          %s387 = smul.addr %s383, 4
          %s388 = sadd.s32 %s384, %s387
          %s389 = smul.addr %s388, 8
          %s390 = scalar_lea.hbm %s0, %s389
          %s391 = sshll.u32 %s390, 4
          %s392 = int_to_ptr.hbm [resolvable:$true] %s391
          %s393 = sshll.u32 %s382, 4
          %s394 = int_to_ptr.vmem [resolvable:$true] %s393
          %399 = dma.hbm_to_vmem [thread:$0]  %s392, 4096, %s394, %s379, 512, 256, 16
        $region20: #{tpu_custom_call.1} parent=15 // pred_fallthru
          _
        // Predicated region
        $region21: #{tpu_custom_call.1} parent=15 // pred_check
          %p400 = pneg %p96
        $region22: #{tpu_custom_call.1} parent=15 // pred_check_branch
          %402 = sbr.rel (%p400) target = $region24
        $region23: #{tpu_custom_call.1} parent=15 // pred_region
          %s403 = sand.u32 %s34, 1
          %s404 = scalar_lea.sflag [#allocation6], %s403
          %s405 = sand.u32 %s86, 1
          %s406 = smul.addr %s405, 256
          %s407 = scalar_lea.vmem [#allocation5], %s406
          %s408 = smul.u32 16, %s41
          %s409 = smul.u32 2, %s42
          %411 = vsyncadd %s404, 0
          %s412 = smul.addr %s408, 4
          %s413 = sadd.s32 %s409, %s412
          %s414 = smul.addr %s413, 8
          %s415 = scalar_lea.hbm %s1, %s414
          %s416 = sshll.u32 %s415, 4
          %s417 = int_to_ptr.hbm [resolvable:$true] %s416
          %s418 = sshll.u32 %s407, 4
          %s419 = int_to_ptr.vmem [resolvable:$true] %s418
          %424 = dma.hbm_to_vmem [thread:$0]  %s417, 4096, %s419, %s404, 512, 256, 16
        $region24: #{tpu_custom_call.1} parent=15 // pred_fallthru
          _
        // Predicated region
        $region25: #{tpu_custom_call.1} parent=15 // pred_check
          %p425 = pneg %p124
        $region26: #{tpu_custom_call.1} parent=15 // pred_check_branch
          %427 = sbr.rel (%p425) target = $region28
        $region27: #{tpu_custom_call.1} parent=15 // pred_region
          %s428 = sand.u32 %s34, 1
          %s429 = scalar_lea.sflag [#allocation6], %s428
          %s430 = sand.u32 %s114, 1
          %s431 = smul.addr %s430, 256
          %s432 = scalar_lea.vmem [#allocation7], %s431
          %s433 = smul.u32 16, %s41
          %s434 = smul.u32 2, %s42
          %436 = vsyncadd %s429, 0
          %s437 = smul.addr %s433, 4
          %s438 = sadd.s32 %s434, %s437
          %s439 = smul.addr %s438, 8
          %s440 = scalar_lea.hbm %s2, %s439
          %s441 = sshll.u32 %s440, 4
          %s442 = int_to_ptr.hbm [resolvable:$true] %s441
          %s443 = sshll.u32 %s432, 4
          %s444 = int_to_ptr.vmem [resolvable:$true] %s443
          %449 = dma.hbm_to_vmem [thread:$0]  %s442, 4096, %s444, %s429, 512, 256, 16
        $region28: #{tpu_custom_call.1} parent=15 // pred_fallthru
          _
        // Predicated region
        $region29: #{tpu_custom_call.1} parent=15 // pred_check
          %p450 = pneg %p150
        $region30: #{tpu_custom_call.1} parent=15 // pred_check_branch
          %452 = sbr.rel (%p450) target = $region32
        $region31: #{tpu_custom_call.1} parent=15 // pred_region
          %p453 = scmp.lt.s32.totalorder %s41, 1
          %s454 = scalar_select %p453, %s41, 1
          %s455 = scalar_lea.vmem %s3, %s454
        $region32: #{tpu_custom_call.1} parent=15 // pred_fallthru
          _
        // Predicated region
        $region33: #{tpu_custom_call.1} parent=15 // pred_check
          %p456 = pneg %p176
        $region34: #{tpu_custom_call.1} parent=15 // pred_check_branch
          %458 = sbr.rel (%p456) target = $region36
        $region35: #{tpu_custom_call.1} parent=15 // pred_region
          %s459 = sand.u32 %s34, 1
          %s460 = scalar_lea.sflag [#allocation9], %s459
          %s461 = sand.u32 %s166, 1
          %s462 = scalar_lea.vmem [#allocation8], %s461
          %464 = vsyncadd %s460, 0
          %s465 = scalar_lea.hbm %s4, %s41
          %s467 = sshll.u32 %s465, 4
          %s468 = int_to_ptr.hbm [resolvable:$true] %s467
          %s469 = sshll.u32 %s462, 4
          %s470 = int_to_ptr.vmem [resolvable:$true] %s469
          %472 = dma.hbm_to_vmem [thread:$0]  %s468, 16, %s470, %s460
        $region36: #{tpu_custom_call.1} parent=15 // pred_fallthru
          _
        // Predicated region
        $region37: #{tpu_custom_call.1} parent=15 // pred_check
          %p473 = pneg %p202
        $region38: #{tpu_custom_call.1} parent=15 // pred_check_branch
          %475 = sbr.rel (%p473) target = $region40
        $region39: #{tpu_custom_call.1} parent=15 // pred_region
          %p476 = scmp.lt.s32.totalorder %s41, 1
          %s477 = scalar_select %p476, %s41, 1
          %s478 = scalar_lea.vmem %s5, %s477
        $region40: #{tpu_custom_call.1} parent=15 // pred_fallthru
          _
        // Predicated region
        $region41: #{tpu_custom_call.1} parent=15 // pred_check
          %p479 = pneg %p228
        $region42: #{tpu_custom_call.1} parent=15 // pred_check_branch
          %481 = sbr.rel (%p479) target = $region44
        $region43: #{tpu_custom_call.1} parent=15 // pred_region
          %s482 = sand.u32 %s34, 1
          %s483 = scalar_lea.sflag [#allocation9], %s482
          %s484 = sand.u32 %s218, 1
          %s485 = smul.addr %s484, 16
          %s486 = scalar_lea.vmem [#allocation10], %s485
          %s487 = smul.u32 2, %s42
          %489 = vsyncadd %s483, 0
          %s490 = smul.addr %s487, 8
          %s491 = scalar_lea.hbm %s6, %s490
          %s493 = sshll.u32 %s491, 4
          %s494 = int_to_ptr.hbm [resolvable:$true] %s493
          %s495 = sshll.u32 %s486, 4
          %s496 = int_to_ptr.vmem [resolvable:$true] %s495
          %498 = dma.hbm_to_vmem [thread:$0]  %s494, 256, %s496, %s483
        $region44: #{tpu_custom_call.1} parent=15 // pred_fallthru
          _
      $region16: #{tpu_custom_call.1} parent=5 // pred_fallthru
        _
      %p499 = scmp.le.s32.totalorder 1, %s34
      %p500 = scmp.lt.s32.totalorder %s34, 5
      %p501 = pnand %p499, %p500
      %p502 = pneg %p501
      // Predicated region
      $region45: #{tpu_custom_call.1} parent=5 // pred_check
        _
      $region46: #{tpu_custom_call.1} parent=5 // pred_check_branch
        %504 = sbr.rel (%p501) target = $region48
      $region47: #{tpu_custom_call.1} parent=5 // pred_region
        %s505 = ssub.s32 %s34, 1
        %s506 = sand.u32 %s61, 1
        %s507 = scalar_lea.sflag [#allocation3], %s506
        %s508 = sand.u32 %s61, 1
        %s509 = smul.addr %s508, 256
        %s510 = scalar_lea.vmem [#allocation2], %s509
        // Predicated region
        $region49: #{tpu_custom_call.1} parent=47 // pred_check
          %p511 = pneg %p74
        $region50: #{tpu_custom_call.1} parent=47 // pred_check_branch
          %513 = sbr.rel (%p511) target = $region52
        $region51: #{tpu_custom_call.1} parent=47 // pred_region
          %515 = dma.done %s507, 4096
        $region52: #{tpu_custom_call.1} parent=47 // pred_fallthru
          _
        %s516 = sand.u32 %s39, 1
        %s517 = scalar_lea.sflag [#allocation6], %s516
        %s518 = sand.u32 %s89, 1
        %s519 = smul.addr %s518, 256
        %s520 = scalar_lea.vmem [#allocation5], %s519
        // Predicated region
        $region53: #{tpu_custom_call.1} parent=47 // pred_check
          %p521 = pneg %p102
        $region54: #{tpu_custom_call.1} parent=47 // pred_check_branch
          %523 = sbr.rel (%p521) target = $region56
        $region55: #{tpu_custom_call.1} parent=47 // pred_region
          %525 = dma.done %s517, 4096
        $region56: #{tpu_custom_call.1} parent=47 // pred_fallthru
          _
        %s526 = sand.u32 %s39, 1
        %s527 = scalar_lea.sflag [#allocation6], %s526
        %s528 = sand.u32 %s117, 1
        %s529 = smul.addr %s528, 256
        %s530 = scalar_lea.vmem [#allocation7], %s529
        // Predicated region
        $region57: #{tpu_custom_call.1} parent=47 // pred_check
          %p531 = pneg %p130
        $region58: #{tpu_custom_call.1} parent=47 // pred_check_branch
          %533 = sbr.rel (%p531) target = $region60
        $region59: #{tpu_custom_call.1} parent=47 // pred_region
          %535 = dma.done %s527, 4096
        $region60: #{tpu_custom_call.1} parent=47 // pred_fallthru
          _
        %s536 = sand.u32 %s39, 1
        %s537 = scalar_lea.sflag [#allocation9], %s536
        %s538 = sand.u32 %s169, 1
        %s539 = scalar_lea.vmem [#allocation8], %s538
        // Predicated region
        $region61: #{tpu_custom_call.1} parent=47 // pred_check
          %p540 = pneg %p182
        $region62: #{tpu_custom_call.1} parent=47 // pred_check_branch
          %542 = sbr.rel (%p540) target = $region64
        $region63: #{tpu_custom_call.1} parent=47 // pred_region
          %544 = dma.done %s537, 16
        $region64: #{tpu_custom_call.1} parent=47 // pred_fallthru
          _
        %s545 = sand.u32 %s39, 1
        %s546 = scalar_lea.sflag [#allocation9], %s545
        %s547 = sand.u32 %s221, 1
        %s548 = smul.addr %s547, 16
        %s549 = scalar_lea.vmem [#allocation10], %s548
        // Predicated region
        $region65: #{tpu_custom_call.1} parent=47 // pred_check
          %p550 = pneg %p234
        $region66: #{tpu_custom_call.1} parent=47 // pred_check_branch
          %552 = sbr.rel (%p550) target = $region68
        $region67: #{tpu_custom_call.1} parent=47 // pred_region
          %554 = dma.done %s546, 256
        $region68: #{tpu_custom_call.1} parent=47 // pred_fallthru
          _
        %s555 = sand.u32 %s61, 1
        %s556 = scalar_lea.sflag [#allocation3], %s555
        %s557 = sand.u32 %s61, 1
        %s558 = smul.addr %s557, 256
        %s559 = scalar_lea.vmem [#allocation2], %s558
        %p560 = pneg %p74
        %p561 = pneg %p71
        %s562 = sand.u32 %s39, 1
        %s563 = scalar_lea.sflag [#allocation6], %s562
        %s564 = sand.u32 %s89, 1
        %s565 = smul.addr %s564, 256
        %s566 = scalar_lea.vmem [#allocation5], %s565
        %p567 = pneg %p102
        %p568 = pneg %p99
        %s569 = sand.u32 %s39, 1
        %s570 = scalar_lea.sflag [#allocation6], %s569
        %s571 = sand.u32 %s117, 1
        %s572 = smul.addr %s571, 256
        %s573 = scalar_lea.vmem [#allocation7], %s572
        %p574 = pneg %p130
        %p575 = pneg %p127
        %p576 = scmp.lt.s32.totalorder %s43, 1
        %s577 = scalar_select %p576, %s43, 1
        %s578 = scalar_lea.vmem %s3, %s577
        %p579 = pneg %p156
        %p580 = pneg %p153
        %s581 = sand.u32 %s39, 1
        %s582 = scalar_lea.sflag [#allocation9], %s581
        %s583 = sand.u32 %s169, 1
        %s584 = scalar_lea.vmem [#allocation8], %s583
        %p585 = pneg %p182
        %p586 = pneg %p179
        %p587 = scmp.lt.s32.totalorder %s43, 1
        %s588 = scalar_select %p587, %s43, 1
        %s589 = scalar_lea.vmem %s5, %s588
        %p590 = pneg %p208
        %p591 = pneg %p205
        %s592 = sand.u32 %s39, 1
        %s593 = scalar_lea.sflag [#allocation9], %s592
        %s594 = sand.u32 %s221, 1
        %s595 = smul.addr %s594, 16
        %s596 = scalar_lea.vmem [#allocation10], %s595
        %p597 = pneg %p234
        %p598 = pneg %p231
        %p599 = pneg %p262
        %p600 = pneg %p259
        %s601 = sand.u32 %s249, 1
        %s602 = scalar_lea.sflag [#allocation4], %s601
        %s603 = sand.u32 %s249, 1
        %s604 = smul.addr %s603, 256
        %s605 = scalar_lea.vmem [#allocation11], %s604
        %p606 = pneg %p288
        %p607 = pneg %p285
        %s608 = sand.u32 %s39, 1
        %s609 = scalar_lea.sflag [#allocation13], %s608
        %s610 = sand.u32 %s275, 1
        %s611 = scalar_lea.vmem [#allocation12], %s610
        %p612 = pneg %p314
        %p613 = pneg %p311
        %s614 = sand.u32 %s39, 1
        %s615 = scalar_lea.sflag [#allocation13], %s614
        %s616 = sand.u32 %s301, 1
        %s617 = smul.addr %s616, 8
        %s618 = scalar_lea.vmem [#allocation14], %s617
        %p619 = pneg %p335
        %p620 = pneg %p332
        %p621 = pneg %p356
        %p622 = pneg %p353
        %s623 = smul.u32 16, %s43
        %s624 = smul.u32 2, %s44
        %s625 = smul.u32 16, %s43
        %s626 = smul.u32 2, %s44
        %s627 = smul.u32 16, %s43
        %s628 = smul.u32 2, %s44
        %p629 = scmp.lt.s32.totalorder %s43, 1
        %s630 = scalar_select %p629, %s43, 1
        %s631 = scalar_lea.vmem %s3, %s630
        %p632 = scmp.lt.s32.totalorder %s43, 1
        %s633 = scalar_select %p632, %s43, 1
        %s634 = scalar_lea.vmem %s5, %s633
        %s635 = smul.u32 2, %s44
        %s636 = smul.u32 16, %s43
        %s637 = smul.u32 2, %s44
        %v638 = vld [vmem:[%s510] sm:$0xff]
        %v639 = vld [vmem:[%s510 + $0x8] sm:$0xff]
        %v640 = vld [vmem:[%s510 + $0x10] sm:$0xff]
        %v641 = vld [vmem:[%s510 + $0x18] sm:$0xff]
        %v642 = vld [vmem:[%s510 + $0x20] sm:$0xff]
        %v643 = vld [vmem:[%s510 + $0x28] sm:$0xff]
        %v644 = vld [vmem:[%s510 + $0x30] sm:$0xff]
        %v645 = vld [vmem:[%s510 + $0x38] sm:$0xff]
        %v646 = vld [vmem:[%s510 + $0x40] sm:$0xff]
        %v647 = vld [vmem:[%s510 + $0x48] sm:$0xff]
        %v648 = vld [vmem:[%s510 + $0x50] sm:$0xff]
        %v649 = vld [vmem:[%s510 + $0x58] sm:$0xff]
        %v650 = vld [vmem:[%s510 + $0x60] sm:$0xff]
        %v651 = vld [vmem:[%s510 + $0x68] sm:$0xff]
        %v652 = vld [vmem:[%s510 + $0x70] sm:$0xff]
        %v653 = vld [vmem:[%s510 + $0x78] sm:$0xff]
        %v654 = vld [vmem:[%s510 + $0x80] sm:$0xff]
        %v655 = vld [vmem:[%s510 + $0x88] sm:$0xff]
        %v656 = vld [vmem:[%s510 + $0x90] sm:$0xff]
        %v657 = vld [vmem:[%s510 + $0x98] sm:$0xff]
        %v658 = vld [vmem:[%s510 + $0xa0] sm:$0xff]
        %v659 = vld [vmem:[%s510 + $0xa8] sm:$0xff]
        %v660 = vld [vmem:[%s510 + $0xb0] sm:$0xff]
        %v661 = vld [vmem:[%s510 + $0xb8] sm:$0xff]
        %v662 = vld [vmem:[%s510 + $0xc0] sm:$0xff]
        %v663 = vld [vmem:[%s510 + $0xc8] sm:$0xff]
        %v664 = vld [vmem:[%s510 + $0xd0] sm:$0xff]
        %v665 = vld [vmem:[%s510 + $0xd8] sm:$0xff]
        %v666 = vld [vmem:[%s510 + $0xe0] sm:$0xff]
        %v667 = vld [vmem:[%s510 + $0xe8] sm:$0xff]
        %v668 = vld [vmem:[%s510 + $0xf0] sm:$0xff]
        %v669 = vld [vmem:[%s510 + $0xf8] sm:$0xff]
        %v670 = vld [vmem:[%s530] sm:$0xff]
        %v671 = vld [vmem:[%s530 + $0x8] sm:$0xff]
        %v672 = vld [vmem:[%s530 + $0x10] sm:$0xff]
        %v673 = vld [vmem:[%s530 + $0x18] sm:$0xff]
        %v674 = vld [vmem:[%s530 + $0x20] sm:$0xff]
        %v675 = vld [vmem:[%s530 + $0x28] sm:$0xff]
        %v676 = vld [vmem:[%s530 + $0x30] sm:$0xff]
        %v677 = vld [vmem:[%s530 + $0x38] sm:$0xff]
        %v678 = vld [vmem:[%s530 + $0x40] sm:$0xff]
        %v679 = vld [vmem:[%s530 + $0x48] sm:$0xff]
        %v680 = vld [vmem:[%s530 + $0x50] sm:$0xff]
        %v681 = vld [vmem:[%s530 + $0x58] sm:$0xff]
        %v682 = vld [vmem:[%s530 + $0x60] sm:$0xff]
        %v683 = vld [vmem:[%s530 + $0x68] sm:$0xff]
        %v684 = vld [vmem:[%s530 + $0x70] sm:$0xff]
        %v685 = vld [vmem:[%s530 + $0x78] sm:$0xff]
        %v686 = vld [vmem:[%s530 + $0x80] sm:$0xff]
        %v687 = vld [vmem:[%s530 + $0x88] sm:$0xff]
        %v688 = vld [vmem:[%s530 + $0x90] sm:$0xff]
        %v689 = vld [vmem:[%s530 + $0x98] sm:$0xff]
        %v690 = vld [vmem:[%s530 + $0xa0] sm:$0xff]
        %v691 = vld [vmem:[%s530 + $0xa8] sm:$0xff]
        %v692 = vld [vmem:[%s530 + $0xb0] sm:$0xff]
        %v693 = vld [vmem:[%s530 + $0xb8] sm:$0xff]
        %v694 = vld [vmem:[%s530 + $0xc0] sm:$0xff]
        %v695 = vld [vmem:[%s530 + $0xc8] sm:$0xff]
        %v696 = vld [vmem:[%s530 + $0xd0] sm:$0xff]
        %v697 = vld [vmem:[%s530 + $0xd8] sm:$0xff]
        %v698 = vld [vmem:[%s530 + $0xe0] sm:$0xff]
        %v699 = vld [vmem:[%s530 + $0xe8] sm:$0xff]
        %v700 = vld [vmem:[%s530 + $0xf0] sm:$0xff]
        %v701 = vld [vmem:[%s530 + $0xf8] sm:$0xff]
        %v702 = vld [vmem:[%s520] sm:$0xff]
        %v703 = vld [vmem:[%s520 + $0x8] sm:$0xff]
        %v704 = vld [vmem:[%s520 + $0x10] sm:$0xff]
        %v705 = vld [vmem:[%s520 + $0x18] sm:$0xff]
        %v706 = vld [vmem:[%s520 + $0x20] sm:$0xff]
        %v707 = vld [vmem:[%s520 + $0x28] sm:$0xff]
        %v708 = vld [vmem:[%s520 + $0x30] sm:$0xff]
        %v709 = vld [vmem:[%s520 + $0x38] sm:$0xff]
        %v710 = vld [vmem:[%s520 + $0x40] sm:$0xff]
        %v711 = vld [vmem:[%s520 + $0x48] sm:$0xff]
        %v712 = vld [vmem:[%s520 + $0x50] sm:$0xff]
        %v713 = vld [vmem:[%s520 + $0x58] sm:$0xff]
        %v714 = vld [vmem:[%s520 + $0x60] sm:$0xff]
        %v715 = vld [vmem:[%s520 + $0x68] sm:$0xff]
        %v716 = vld [vmem:[%s520 + $0x70] sm:$0xff]
        %v717 = vld [vmem:[%s520 + $0x78] sm:$0xff]
        %v718 = vld [vmem:[%s520 + $0x80] sm:$0xff]
        %v719 = vld [vmem:[%s520 + $0x88] sm:$0xff]
        %v720 = vld [vmem:[%s520 + $0x90] sm:$0xff]
        %v721 = vld [vmem:[%s520 + $0x98] sm:$0xff]
        %v722 = vld [vmem:[%s520 + $0xa0] sm:$0xff]
        %v723 = vld [vmem:[%s520 + $0xa8] sm:$0xff]
        %v724 = vld [vmem:[%s520 + $0xb0] sm:$0xff]
        %v725 = vld [vmem:[%s520 + $0xb8] sm:$0xff]
        %v726 = vld [vmem:[%s520 + $0xc0] sm:$0xff]
        %v727 = vld [vmem:[%s520 + $0xc8] sm:$0xff]
        %v728 = vld [vmem:[%s520 + $0xd0] sm:$0xff]
        %v729 = vld [vmem:[%s520 + $0xd8] sm:$0xff]
        %v730 = vld [vmem:[%s520 + $0xe0] sm:$0xff]
        %v731 = vld [vmem:[%s520 + $0xe8] sm:$0xff]
        %v732 = vld [vmem:[%s520 + $0xf0] sm:$0xff]
        %v733 = vld [vmem:[%s520 + $0xf8] sm:$0xff]
        %v734 = vand.u32 2147483647, %v702
        %v735 = vand.u32 2147483647, %v703
        %v736 = vand.u32 2147483647, %v704
        %v737 = vand.u32 2147483647, %v705
        %v738 = vand.u32 2147483647, %v706
        %v739 = vand.u32 2147483647, %v707
        %v740 = vand.u32 2147483647, %v708
        %v741 = vand.u32 2147483647, %v709
        %v742 = vand.u32 2147483647, %v710
        %v743 = vand.u32 2147483647, %v711
        %v744 = vand.u32 2147483647, %v712
        %v745 = vand.u32 2147483647, %v713
        %v746 = vand.u32 2147483647, %v714
        %v747 = vand.u32 2147483647, %v715
        %v748 = vand.u32 2147483647, %v716
        %v749 = vand.u32 2147483647, %v717
        %v750 = vand.u32 2147483647, %v718
        %v751 = vand.u32 2147483647, %v719
        %v752 = vand.u32 2147483647, %v720
        %v753 = vand.u32 2147483647, %v721
        %v754 = vand.u32 2147483647, %v722
        %v755 = vand.u32 2147483647, %v723
        %v756 = vand.u32 2147483647, %v724
        %v757 = vand.u32 2147483647, %v725
        %v758 = vand.u32 2147483647, %v726
        %v759 = vand.u32 2147483647, %v727
        %v760 = vand.u32 2147483647, %v728
        %v761 = vand.u32 2147483647, %v729
        %v762 = vand.u32 2147483647, %v730
        %v763 = vand.u32 2147483647, %v731
        %v764 = vand.u32 2147483647, %v732
        %v765 = vand.u32 2147483647, %v733
        %v766 = vsub.f32 0.0, %v734
        %v767 = vsub.f32 0.0, %v735
        %v768 = vsub.f32 0.0, %v736
        %v769 = vsub.f32 0.0, %v737
        %v770 = vsub.f32 0.0, %v738
        %v771 = vsub.f32 0.0, %v739
        %v772 = vsub.f32 0.0, %v740
        %v773 = vsub.f32 0.0, %v741
        %v774 = vsub.f32 0.0, %v742
        %v775 = vsub.f32 0.0, %v743
        %v776 = vsub.f32 0.0, %v744
        %v777 = vsub.f32 0.0, %v745
        %v778 = vsub.f32 0.0, %v746
        %v779 = vsub.f32 0.0, %v747
        %v780 = vsub.f32 0.0, %v748
        %v781 = vsub.f32 0.0, %v749
        %v782 = vsub.f32 0.0, %v750
        %v783 = vsub.f32 0.0, %v751
        %v784 = vsub.f32 0.0, %v752
        %v785 = vsub.f32 0.0, %v753
        %v786 = vsub.f32 0.0, %v754
        %v787 = vsub.f32 0.0, %v755
        %v788 = vsub.f32 0.0, %v756
        %v789 = vsub.f32 0.0, %v757
        %v790 = vsub.f32 0.0, %v758
        %v791 = vsub.f32 0.0, %v759
        %v792 = vsub.f32 0.0, %v760
        %v793 = vsub.f32 0.0, %v761
        %v794 = vsub.f32 0.0, %v762
        %v795 = vsub.f32 0.0, %v763
        %v796 = vsub.f32 0.0, %v764
        %v797 = vsub.f32 0.0, %v765
        %v798 = vmul.f32 %v766, 1.442695
        %v799 = vpow.pop %v798
        %v800 = vmul.f32 %v767, 1.442695
        %v801 = vpow.pop %v800
        %v802 = vmul.f32 %v768, 1.442695
        %v803 = vpow.pop %v802
        %v804 = vmul.f32 %v769, 1.442695
        %v805 = vpow.pop %v804
        %v806 = vmul.f32 %v770, 1.442695
        %v807 = vpow.pop %v806
        %v808 = vmul.f32 %v771, 1.442695
        %v809 = vpow.pop %v808
        %v810 = vmul.f32 %v772, 1.442695
        %v811 = vpow.pop %v810
        %v812 = vmul.f32 %v773, 1.442695
        %v813 = vpow.pop %v812
        %v814 = vmul.f32 %v774, 1.442695
        %v815 = vpow.pop %v814
        %v816 = vmul.f32 %v775, 1.442695
        %v817 = vpow.pop %v816
        %v818 = vmul.f32 %v776, 1.442695
        %v819 = vpow.pop %v818
        %v820 = vmul.f32 %v777, 1.442695
        %v821 = vpow.pop %v820
        %v822 = vmul.f32 %v778, 1.442695
        %v823 = vpow.pop %v822
        %v824 = vmul.f32 %v779, 1.442695
        %v825 = vpow.pop %v824
        %v826 = vmul.f32 %v780, 1.442695
        %v827 = vpow.pop %v826
        %v828 = vmul.f32 %v781, 1.442695
        %v829 = vpow.pop %v828
        %v830 = vmul.f32 %v782, 1.442695
        %v831 = vpow.pop %v830
        %v832 = vmul.f32 %v783, 1.442695
        %v833 = vpow.pop %v832
        %v834 = vmul.f32 %v784, 1.442695
        %v835 = vpow.pop %v834
        %v836 = vmul.f32 %v785, 1.442695
        %v837 = vpow.pop %v836
        %v838 = vmul.f32 %v786, 1.442695
        %v839 = vpow.pop %v838
        %v840 = vmul.f32 %v787, 1.442695
        %v841 = vpow.pop %v840
        %v842 = vmul.f32 %v788, 1.442695
        %v843 = vpow.pop %v842
        %v844 = vmul.f32 %v789, 1.442695
        %v845 = vpow.pop %v844
        %v846 = vmul.f32 %v790, 1.442695
        %v847 = vpow.pop %v846
        %v848 = vmul.f32 %v791, 1.442695
        %v849 = vpow.pop %v848
        %v850 = vmul.f32 %v792, 1.442695
        %v851 = vpow.pop %v850
        %v852 = vmul.f32 %v793, 1.442695
        %v853 = vpow.pop %v852
        %v854 = vmul.f32 %v794, 1.442695
        %v855 = vpow.pop %v854
        %v856 = vmul.f32 %v795, 1.442695
        %v857 = vpow.pop %v856
        %v858 = vmul.f32 %v796, 1.442695
        %v859 = vpow.pop %v858
        %v860 = vmul.f32 %v797, 1.442695
        %v861 = vpow.pop %v860
        %v862 = vadd.f32 %v799, 1.0
        %v863 = vlog2.pop %v862
        %v864 = vmul.f32 %v863, 0.6931472
        %v865 = vmul.f32 -0.5, %v799
        %v866 = vadd.f32 %v865, 1.0
        %v867 = vmul.f32 %v866, %v799
        %v868 = vand.u32 2147483647, %v799
        %vm869 = vcmp.lt.f32.partialorder %v868, 0.0004427343
        %v870 = vsel %vm869, %v867, %v864
        %v871 = vadd.f32 %v801, 1.0
        %v872 = vlog2.pop %v871
        %v873 = vmul.f32 %v872, 0.6931472
        %v874 = vmul.f32 -0.5, %v801
        %v875 = vadd.f32 %v874, 1.0
        %v876 = vmul.f32 %v875, %v801
        %v877 = vand.u32 2147483647, %v801
        %vm878 = vcmp.lt.f32.partialorder %v877, 0.0004427343
        %v879 = vsel %vm878, %v876, %v873
        %v880 = vadd.f32 %v803, 1.0
        %v881 = vlog2.pop %v880
        %v882 = vmul.f32 %v881, 0.6931472
        %v883 = vmul.f32 -0.5, %v803
        %v884 = vadd.f32 %v883, 1.0
        %v885 = vmul.f32 %v884, %v803
        %v886 = vand.u32 2147483647, %v803
        %vm887 = vcmp.lt.f32.partialorder %v886, 0.0004427343
        %v888 = vsel %vm887, %v885, %v882
        %v889 = vadd.f32 %v805, 1.0
        %v890 = vlog2.pop %v889
        %v891 = vmul.f32 %v890, 0.6931472
        %v892 = vmul.f32 -0.5, %v805
        %v893 = vadd.f32 %v892, 1.0
        %v894 = vmul.f32 %v893, %v805
        %v895 = vand.u32 2147483647, %v805
        %vm896 = vcmp.lt.f32.partialorder %v895, 0.0004427343
        %v897 = vsel %vm896, %v894, %v891
        %v898 = vadd.f32 %v807, 1.0
        %v899 = vlog2.pop %v898
        %v900 = vmul.f32 %v899, 0.6931472
        %v901 = vmul.f32 -0.5, %v807
        %v902 = vadd.f32 %v901, 1.0
        %v903 = vmul.f32 %v902, %v807
        %v904 = vand.u32 2147483647, %v807
        %vm905 = vcmp.lt.f32.partialorder %v904, 0.0004427343
        %v906 = vsel %vm905, %v903, %v900
        %v907 = vadd.f32 %v809, 1.0
        %v908 = vlog2.pop %v907
        %v909 = vmul.f32 %v908, 0.6931472
        %v910 = vmul.f32 -0.5, %v809
        %v911 = vadd.f32 %v910, 1.0
        %v912 = vmul.f32 %v911, %v809
        %v913 = vand.u32 2147483647, %v809
        %vm914 = vcmp.lt.f32.partialorder %v913, 0.0004427343
        %v915 = vsel %vm914, %v912, %v909
        %v916 = vadd.f32 %v811, 1.0
        %v917 = vlog2.pop %v916
        %v918 = vmul.f32 %v917, 0.6931472
        %v919 = vmul.f32 -0.5, %v811
        %v920 = vadd.f32 %v919, 1.0
        %v921 = vmul.f32 %v920, %v811
        %v922 = vand.u32 2147483647, %v811
        %vm923 = vcmp.lt.f32.partialorder %v922, 0.0004427343
        %v924 = vsel %vm923, %v921, %v918
        %v925 = vadd.f32 %v813, 1.0
        %v926 = vlog2.pop %v925
        %v927 = vmul.f32 %v926, 0.6931472
        %v928 = vmul.f32 -0.5, %v813
        %v929 = vadd.f32 %v928, 1.0
        %v930 = vmul.f32 %v929, %v813
        %v931 = vand.u32 2147483647, %v813
        %vm932 = vcmp.lt.f32.partialorder %v931, 0.0004427343
        %v933 = vsel %vm932, %v930, %v927
        %v934 = vadd.f32 %v815, 1.0
        %v935 = vlog2.pop %v934
        %v936 = vmul.f32 %v935, 0.6931472
        %v937 = vmul.f32 -0.5, %v815
        %v938 = vadd.f32 %v937, 1.0
        %v939 = vmul.f32 %v938, %v815
        %v940 = vand.u32 2147483647, %v815
        %vm941 = vcmp.lt.f32.partialorder %v940, 0.0004427343
        %v942 = vsel %vm941, %v939, %v936
        %v943 = vadd.f32 %v817, 1.0
        %v944 = vlog2.pop %v943
        %v945 = vmul.f32 %v944, 0.6931472
        %v946 = vmul.f32 -0.5, %v817
        %v947 = vadd.f32 %v946, 1.0
        %v948 = vmul.f32 %v947, %v817
        %v949 = vand.u32 2147483647, %v817
        %vm950 = vcmp.lt.f32.partialorder %v949, 0.0004427343
        %v951 = vsel %vm950, %v948, %v945
        %v952 = vadd.f32 %v819, 1.0
        %v953 = vlog2.pop %v952
        %v954 = vmul.f32 %v953, 0.6931472
        %v955 = vmul.f32 -0.5, %v819
        %v956 = vadd.f32 %v955, 1.0
        %v957 = vmul.f32 %v956, %v819
        %v958 = vand.u32 2147483647, %v819
        %vm959 = vcmp.lt.f32.partialorder %v958, 0.0004427343
        %v960 = vsel %vm959, %v957, %v954
        %v961 = vadd.f32 %v821, 1.0
        %v962 = vlog2.pop %v961
        %v963 = vmul.f32 %v962, 0.6931472
        %v964 = vmul.f32 -0.5, %v821
        %v965 = vadd.f32 %v964, 1.0
        %v966 = vmul.f32 %v965, %v821
        %v967 = vand.u32 2147483647, %v821
        %vm968 = vcmp.lt.f32.partialorder %v967, 0.0004427343
        %v969 = vsel %vm968, %v966, %v963
        %v970 = vadd.f32 %v823, 1.0
        %v971 = vlog2.pop %v970
        %v972 = vmul.f32 %v971, 0.6931472
        %v973 = vmul.f32 -0.5, %v823
        %v974 = vadd.f32 %v973, 1.0
        %v975 = vmul.f32 %v974, %v823
        %v976 = vand.u32 2147483647, %v823
        %vm977 = vcmp.lt.f32.partialorder %v976, 0.0004427343
        %v978 = vsel %vm977, %v975, %v972
        %v979 = vadd.f32 %v825, 1.0
        %v980 = vlog2.pop %v979
        %v981 = vmul.f32 %v980, 0.6931472
        %v982 = vmul.f32 -0.5, %v825
        %v983 = vadd.f32 %v982, 1.0
        %v984 = vmul.f32 %v983, %v825
        %v985 = vand.u32 2147483647, %v825
        %vm986 = vcmp.lt.f32.partialorder %v985, 0.0004427343
        %v987 = vsel %vm986, %v984, %v981
        %v988 = vadd.f32 %v827, 1.0
        %v989 = vlog2.pop %v988
        %v990 = vmul.f32 %v989, 0.6931472
        %v991 = vmul.f32 -0.5, %v827
        %v992 = vadd.f32 %v991, 1.0
        %v993 = vmul.f32 %v992, %v827
        %v994 = vand.u32 2147483647, %v827
        %vm995 = vcmp.lt.f32.partialorder %v994, 0.0004427343
        %v996 = vsel %vm995, %v993, %v990
        %v997 = vadd.f32 %v829, 1.0
        %v998 = vlog2.pop %v997
        %v999 = vmul.f32 %v998, 0.6931472
        %v1000 = vmul.f32 -0.5, %v829
        %v1001 = vadd.f32 %v1000, 1.0
        %v1002 = vmul.f32 %v1001, %v829
        %v1003 = vand.u32 2147483647, %v829
        %vm1004 = vcmp.lt.f32.partialorder %v1003, 0.0004427343
        %v1005 = vsel %vm1004, %v1002, %v999
        %v1006 = vadd.f32 %v831, 1.0
        %v1007 = vlog2.pop %v1006
        %v1008 = vmul.f32 %v1007, 0.6931472
        %v1009 = vmul.f32 -0.5, %v831
        %v1010 = vadd.f32 %v1009, 1.0
        %v1011 = vmul.f32 %v1010, %v831
        %v1012 = vand.u32 2147483647, %v831
        %vm1013 = vcmp.lt.f32.partialorder %v1012, 0.0004427343
        %v1014 = vsel %vm1013, %v1011, %v1008
        %v1015 = vadd.f32 %v833, 1.0
        %v1016 = vlog2.pop %v1015
        %v1017 = vmul.f32 %v1016, 0.6931472
        %v1018 = vmul.f32 -0.5, %v833
        %v1019 = vadd.f32 %v1018, 1.0
        %v1020 = vmul.f32 %v1019, %v833
        %v1021 = vand.u32 2147483647, %v833
        %vm1022 = vcmp.lt.f32.partialorder %v1021, 0.0004427343
        %v1023 = vsel %vm1022, %v1020, %v1017
        %v1024 = vadd.f32 %v835, 1.0
        %v1025 = vlog2.pop %v1024
        %v1026 = vmul.f32 %v1025, 0.6931472
        %v1027 = vmul.f32 -0.5, %v835
        %v1028 = vadd.f32 %v1027, 1.0
        %v1029 = vmul.f32 %v1028, %v835
        %v1030 = vand.u32 2147483647, %v835
        %vm1031 = vcmp.lt.f32.partialorder %v1030, 0.0004427343
        %v1032 = vsel %vm1031, %v1029, %v1026
        %v1033 = vadd.f32 %v837, 1.0
        %v1034 = vlog2.pop %v1033
        %v1035 = vmul.f32 %v1034, 0.6931472
        %v1036 = vmul.f32 -0.5, %v837
        %v1037 = vadd.f32 %v1036, 1.0
        %v1038 = vmul.f32 %v1037, %v837
        %v1039 = vand.u32 2147483647, %v837
        %vm1040 = vcmp.lt.f32.partialorder %v1039, 0.0004427343
        %v1041 = vsel %vm1040, %v1038, %v1035
        %v1042 = vadd.f32 %v839, 1.0
        %v1043 = vlog2.pop %v1042
        %v1044 = vmul.f32 %v1043, 0.6931472
        %v1045 = vmul.f32 -0.5, %v839
        %v1046 = vadd.f32 %v1045, 1.0
        %v1047 = vmul.f32 %v1046, %v839
        %v1048 = vand.u32 2147483647, %v839
        %vm1049 = vcmp.lt.f32.partialorder %v1048, 0.0004427343
        %v1050 = vsel %vm1049, %v1047, %v1044
        %v1051 = vadd.f32 %v841, 1.0
        %v1052 = vlog2.pop %v1051
        %v1053 = vmul.f32 %v1052, 0.6931472
        %v1054 = vmul.f32 -0.5, %v841
        %v1055 = vadd.f32 %v1054, 1.0
        %v1056 = vmul.f32 %v1055, %v841
        %v1057 = vand.u32 2147483647, %v841
        %vm1058 = vcmp.lt.f32.partialorder %v1057, 0.0004427343
        %v1059 = vsel %vm1058, %v1056, %v1053
        %v1060 = vadd.f32 %v843, 1.0
        %v1061 = vlog2.pop %v1060
        %v1062 = vmul.f32 %v1061, 0.6931472
        %v1063 = vmul.f32 -0.5, %v843
        %v1064 = vadd.f32 %v1063, 1.0
        %v1065 = vmul.f32 %v1064, %v843
        %v1066 = vand.u32 2147483647, %v843
        %vm1067 = vcmp.lt.f32.partialorder %v1066, 0.0004427343
        %v1068 = vsel %vm1067, %v1065, %v1062
        %v1069 = vadd.f32 %v845, 1.0
        %v1070 = vlog2.pop %v1069
        %v1071 = vmul.f32 %v1070, 0.6931472
        %v1072 = vmul.f32 -0.5, %v845
        %v1073 = vadd.f32 %v1072, 1.0
        %v1074 = vmul.f32 %v1073, %v845
        %v1075 = vand.u32 2147483647, %v845
        %vm1076 = vcmp.lt.f32.partialorder %v1075, 0.0004427343
        %v1077 = vsel %vm1076, %v1074, %v1071
        %v1078 = vadd.f32 %v847, 1.0
        %v1079 = vlog2.pop %v1078
        %v1080 = vmul.f32 %v1079, 0.6931472
        %v1081 = vmul.f32 -0.5, %v847
        %v1082 = vadd.f32 %v1081, 1.0
        %v1083 = vmul.f32 %v1082, %v847
        %v1084 = vand.u32 2147483647, %v847
        %vm1085 = vcmp.lt.f32.partialorder %v1084, 0.0004427343
        %v1086 = vsel %vm1085, %v1083, %v1080
        %v1087 = vadd.f32 %v849, 1.0
        %v1088 = vlog2.pop %v1087
        %v1089 = vmul.f32 %v1088, 0.6931472
        %v1090 = vmul.f32 -0.5, %v849
        %v1091 = vadd.f32 %v1090, 1.0
        %v1092 = vmul.f32 %v1091, %v849
        %v1093 = vand.u32 2147483647, %v849
        %vm1094 = vcmp.lt.f32.partialorder %v1093, 0.0004427343
        %v1095 = vsel %vm1094, %v1092, %v1089
        %v1096 = vadd.f32 %v851, 1.0
        %v1097 = vlog2.pop %v1096
        %v1098 = vmul.f32 %v1097, 0.6931472
        %v1099 = vmul.f32 -0.5, %v851
        %v1100 = vadd.f32 %v1099, 1.0
        %v1101 = vmul.f32 %v1100, %v851
        %v1102 = vand.u32 2147483647, %v851
        %vm1103 = vcmp.lt.f32.partialorder %v1102, 0.0004427343
        %v1104 = vsel %vm1103, %v1101, %v1098
        %v1105 = vadd.f32 %v853, 1.0
        %v1106 = vlog2.pop %v1105
        %v1107 = vmul.f32 %v1106, 0.6931472
        %v1108 = vmul.f32 -0.5, %v853
        %v1109 = vadd.f32 %v1108, 1.0
        %v1110 = vmul.f32 %v1109, %v853
        %v1111 = vand.u32 2147483647, %v853
        %vm1112 = vcmp.lt.f32.partialorder %v1111, 0.0004427343
        %v1113 = vsel %vm1112, %v1110, %v1107
        %v1114 = vadd.f32 %v855, 1.0
        %v1115 = vlog2.pop %v1114
        %v1116 = vmul.f32 %v1115, 0.6931472
        %v1117 = vmul.f32 -0.5, %v855
        %v1118 = vadd.f32 %v1117, 1.0
        %v1119 = vmul.f32 %v1118, %v855
        %v1120 = vand.u32 2147483647, %v855
        %vm1121 = vcmp.lt.f32.partialorder %v1120, 0.0004427343
        %v1122 = vsel %vm1121, %v1119, %v1116
        %v1123 = vadd.f32 %v857, 1.0
        %v1124 = vlog2.pop %v1123
        %v1125 = vmul.f32 %v1124, 0.6931472
        %v1126 = vmul.f32 -0.5, %v857
        %v1127 = vadd.f32 %v1126, 1.0
        %v1128 = vmul.f32 %v1127, %v857
        %v1129 = vand.u32 2147483647, %v857
        %vm1130 = vcmp.lt.f32.partialorder %v1129, 0.0004427343
        %v1131 = vsel %vm1130, %v1128, %v1125
        %v1132 = vadd.f32 %v859, 1.0
        %v1133 = vlog2.pop %v1132
        %v1134 = vmul.f32 %v1133, 0.6931472
        %v1135 = vmul.f32 -0.5, %v859
        %v1136 = vadd.f32 %v1135, 1.0
        %v1137 = vmul.f32 %v1136, %v859
        %v1138 = vand.u32 2147483647, %v859
        %vm1139 = vcmp.lt.f32.partialorder %v1138, 0.0004427343
        %v1140 = vsel %vm1139, %v1137, %v1134
        %v1141 = vadd.f32 %v861, 1.0
        %v1142 = vlog2.pop %v1141
        %v1143 = vmul.f32 %v1142, 0.6931472
        %v1144 = vmul.f32 -0.5, %v861
        %v1145 = vadd.f32 %v1144, 1.0
        %v1146 = vmul.f32 %v1145, %v861
        %v1147 = vand.u32 2147483647, %v861
        %vm1148 = vcmp.lt.f32.partialorder %v1147, 0.0004427343
        %v1149 = vsel %vm1148, %v1146, %v1143
        %v1150 = vmax.f32 %v702, 0.0
        %v1151 = vmax.f32 %v703, 0.0
        %v1152 = vmax.f32 %v704, 0.0
        %v1153 = vmax.f32 %v705, 0.0
        %v1154 = vmax.f32 %v706, 0.0
        %v1155 = vmax.f32 %v707, 0.0
        %v1156 = vmax.f32 %v708, 0.0
        %v1157 = vmax.f32 %v709, 0.0
        %v1158 = vmax.f32 %v710, 0.0
        %v1159 = vmax.f32 %v711, 0.0
        %v1160 = vmax.f32 %v712, 0.0
        %v1161 = vmax.f32 %v713, 0.0
        %v1162 = vmax.f32 %v714, 0.0
        %v1163 = vmax.f32 %v715, 0.0
        %v1164 = vmax.f32 %v716, 0.0
        %v1165 = vmax.f32 %v717, 0.0
        %v1166 = vmax.f32 %v718, 0.0
        %v1167 = vmax.f32 %v719, 0.0
        %v1168 = vmax.f32 %v720, 0.0
        %v1169 = vmax.f32 %v721, 0.0
        %v1170 = vmax.f32 %v722, 0.0
        %v1171 = vmax.f32 %v723, 0.0
        %v1172 = vmax.f32 %v724, 0.0
        %v1173 = vmax.f32 %v725, 0.0
        %v1174 = vmax.f32 %v726, 0.0
        %v1175 = vmax.f32 %v727, 0.0
        %v1176 = vmax.f32 %v728, 0.0
        %v1177 = vmax.f32 %v729, 0.0
        %v1178 = vmax.f32 %v730, 0.0
        %v1179 = vmax.f32 %v731, 0.0
        %v1180 = vmax.f32 %v732, 0.0
        %v1181 = vmax.f32 %v733, 0.0
        %v1182 = vadd.f32 %v870, %v1150
        %v1183 = vadd.f32 %v879, %v1151
        %v1184 = vadd.f32 %v888, %v1152
        %v1185 = vadd.f32 %v897, %v1153
        %v1186 = vadd.f32 %v906, %v1154
        %v1187 = vadd.f32 %v915, %v1155
        %v1188 = vadd.f32 %v924, %v1156
        %v1189 = vadd.f32 %v933, %v1157
        %v1190 = vadd.f32 %v942, %v1158
        %v1191 = vadd.f32 %v951, %v1159
        %v1192 = vadd.f32 %v960, %v1160
        %v1193 = vadd.f32 %v969, %v1161
        %v1194 = vadd.f32 %v978, %v1162
        %v1195 = vadd.f32 %v987, %v1163
        %v1196 = vadd.f32 %v996, %v1164
        %v1197 = vadd.f32 %v1005, %v1165
        %v1198 = vadd.f32 %v1014, %v1166
        %v1199 = vadd.f32 %v1023, %v1167
        %v1200 = vadd.f32 %v1032, %v1168
        %v1201 = vadd.f32 %v1041, %v1169
        %v1202 = vadd.f32 %v1050, %v1170
        %v1203 = vadd.f32 %v1059, %v1171
        %v1204 = vadd.f32 %v1068, %v1172
        %v1205 = vadd.f32 %v1077, %v1173
        %v1206 = vadd.f32 %v1086, %v1174
        %v1207 = vadd.f32 %v1095, %v1175
        %v1208 = vadd.f32 %v1104, %v1176
        %v1209 = vadd.f32 %v1113, %v1177
        %v1210 = vadd.f32 %v1122, %v1178
        %v1211 = vadd.f32 %v1131, %v1179
        %v1212 = vadd.f32 %v1140, %v1180
        %v1213 = vadd.f32 %v1149, %v1181
        %v1214 = vmul.f32 %v1182, %v670
        %v1215 = vmul.f32 %v1183, %v671
        %v1216 = vmul.f32 %v1184, %v672
        %v1217 = vmul.f32 %v1185, %v673
        %v1218 = vmul.f32 %v1186, %v674
        %v1219 = vmul.f32 %v1187, %v675
        %v1220 = vmul.f32 %v1188, %v676
        %v1221 = vmul.f32 %v1189, %v677
        %v1222 = vmul.f32 %v1190, %v678
        %v1223 = vmul.f32 %v1191, %v679
        %v1224 = vmul.f32 %v1192, %v680
        %v1225 = vmul.f32 %v1193, %v681
        %v1226 = vmul.f32 %v1194, %v682
        %v1227 = vmul.f32 %v1195, %v683
        %v1228 = vmul.f32 %v1196, %v684
        %v1229 = vmul.f32 %v1197, %v685
        %v1230 = vmul.f32 %v1198, %v686
        %v1231 = vmul.f32 %v1199, %v687
        %v1232 = vmul.f32 %v1200, %v688
        %v1233 = vmul.f32 %v1201, %v689
        %v1234 = vmul.f32 %v1202, %v690
        %v1235 = vmul.f32 %v1203, %v691
        %v1236 = vmul.f32 %v1204, %v692
        %v1237 = vmul.f32 %v1205, %v693
        %v1238 = vmul.f32 %v1206, %v694
        %v1239 = vmul.f32 %v1207, %v695
        %v1240 = vmul.f32 %v1208, %v696
        %v1241 = vmul.f32 %v1209, %v697
        %v1242 = vmul.f32 %v1210, %v698
        %v1243 = vmul.f32 %v1211, %v699
        %v1244 = vmul.f32 %v1212, %v700
        %v1245 = vmul.f32 %v1213, %v701
        %v1246 = vadd.f32 %v638, %v1214
        %v1247 = vadd.f32 %v639, %v1215
        %v1248 = vadd.f32 %v640, %v1216
        %v1249 = vadd.f32 %v641, %v1217
        %v1250 = vadd.f32 %v642, %v1218
        %v1251 = vadd.f32 %v643, %v1219
        %v1252 = vadd.f32 %v644, %v1220
        %v1253 = vadd.f32 %v645, %v1221
        %v1254 = vadd.f32 %v646, %v1222
        %v1255 = vadd.f32 %v647, %v1223
        %v1256 = vadd.f32 %v648, %v1224
        %v1257 = vadd.f32 %v649, %v1225
        %v1258 = vadd.f32 %v650, %v1226
        %v1259 = vadd.f32 %v651, %v1227
        %v1260 = vadd.f32 %v652, %v1228
        %v1261 = vadd.f32 %v653, %v1229
        %v1262 = vadd.f32 %v654, %v1230
        %v1263 = vadd.f32 %v655, %v1231
        %v1264 = vadd.f32 %v656, %v1232
        %v1265 = vadd.f32 %v657, %v1233
        %v1266 = vadd.f32 %v658, %v1234
        %v1267 = vadd.f32 %v659, %v1235
        %v1268 = vadd.f32 %v660, %v1236
        %v1269 = vadd.f32 %v661, %v1237
        %v1270 = vadd.f32 %v662, %v1238
        %v1271 = vadd.f32 %v663, %v1239
        %v1272 = vadd.f32 %v664, %v1240
        %v1273 = vadd.f32 %v665, %v1241
        %v1274 = vadd.f32 %v666, %v1242
        %v1275 = vadd.f32 %v667, %v1243
        %v1276 = vadd.f32 %v668, %v1244
        %v1277 = vadd.f32 %v669, %v1245
        %1278 = vst [vmem:[%s605] sm:$0xff] %v1246
        %1279 = vst [vmem:[%s605 + $0x8] sm:$0xff] %v1247
        %1280 = vst [vmem:[%s605 + $0x10] sm:$0xff] %v1248
        %1281 = vst [vmem:[%s605 + $0x18] sm:$0xff] %v1249
        %1282 = vst [vmem:[%s605 + $0x20] sm:$0xff] %v1250
        %1283 = vst [vmem:[%s605 + $0x28] sm:$0xff] %v1251
        %1284 = vst [vmem:[%s605 + $0x30] sm:$0xff] %v1252
        %1285 = vst [vmem:[%s605 + $0x38] sm:$0xff] %v1253
        %1286 = vst [vmem:[%s605 + $0x40] sm:$0xff] %v1254
        %1287 = vst [vmem:[%s605 + $0x48] sm:$0xff] %v1255
        %1288 = vst [vmem:[%s605 + $0x50] sm:$0xff] %v1256
        %1289 = vst [vmem:[%s605 + $0x58] sm:$0xff] %v1257
        %1290 = vst [vmem:[%s605 + $0x60] sm:$0xff] %v1258
        %1291 = vst [vmem:[%s605 + $0x68] sm:$0xff] %v1259
        %1292 = vst [vmem:[%s605 + $0x70] sm:$0xff] %v1260
        %1293 = vst [vmem:[%s605 + $0x78] sm:$0xff] %v1261
        %1294 = vst [vmem:[%s605 + $0x80] sm:$0xff] %v1262
        %1295 = vst [vmem:[%s605 + $0x88] sm:$0xff] %v1263
        %1296 = vst [vmem:[%s605 + $0x90] sm:$0xff] %v1264
        %1297 = vst [vmem:[%s605 + $0x98] sm:$0xff] %v1265
        %1298 = vst [vmem:[%s605 + $0xa0] sm:$0xff] %v1266
        %1299 = vst [vmem:[%s605 + $0xa8] sm:$0xff] %v1267
        %1300 = vst [vmem:[%s605 + $0xb0] sm:$0xff] %v1268
        %1301 = vst [vmem:[%s605 + $0xb8] sm:$0xff] %v1269
        %1302 = vst [vmem:[%s605 + $0xc0] sm:$0xff] %v1270
        %1303 = vst [vmem:[%s605 + $0xc8] sm:$0xff] %v1271
        %1304 = vst [vmem:[%s605 + $0xd0] sm:$0xff] %v1272
        %1305 = vst [vmem:[%s605 + $0xd8] sm:$0xff] %v1273
        %1306 = vst [vmem:[%s605 + $0xe0] sm:$0xff] %v1274
        %1307 = vst [vmem:[%s605 + $0xe8] sm:$0xff] %v1275
        %1308 = vst [vmem:[%s605 + $0xf0] sm:$0xff] %v1276
        %1309 = vst [vmem:[%s605 + $0xf8] sm:$0xff] %v1277
        %v1310 = vld [vmem:[%s631] sm:$0x1]
        %v1311 = vld [vmem:[%s634] sm:$0x1]
        %v1312 = vld [vmem:[%s539] sm:$0x1]
        %v1313 = vand.u32 2147483647, %v1312
        %v1314 = vsub.f32 0.0, %v1313
        %v1315 = vmul.f32 %v1314, 1.442695
        %v1316 = vpow.pop %v1315
        %v1317 = vadd.f32 %v1316, 1.0
        %v1318 = vlog2.pop %v1317
        %v1319 = vmul.f32 %v1318, 0.6931472
        %v1320 = vmul.f32 -0.5, %v1316
        %v1321 = vadd.f32 %v1320, 1.0
        %v1322 = vmul.f32 %v1321, %v1316
        %v1323 = vand.u32 2147483647, %v1316
        %vm1324 = vcmp.lt.f32.partialorder %v1323, 0.0004427343
        %v1325 = vsel %vm1324, %v1322, %v1319
        %v1326 = vmax.f32 %v1312, 0.0
        %v1327 = vadd.f32 %v1325, %v1326
        %v1328 = vmul.f32 %v1327, %v1311
        %v1329 = vadd.f32 %v1310, %v1328
        %1330 = vst [vmem:[%s611] sm:$0x1] %v1329
        %v1331 = vsub.f32 %v1246, 0.5
        %v1332 = vsub.f32 %v1247, 0.5
        %v1333 = vsub.f32 %v1248, 0.5
        %v1334 = vsub.f32 %v1249, 0.5
        %v1335 = vsub.f32 %v1250, 0.5
        %v1336 = vsub.f32 %v1251, 0.5
        %v1337 = vsub.f32 %v1252, 0.5
        %v1338 = vsub.f32 %v1253, 0.5
        %v1339 = vsub.f32 %v1254, 0.5
        %v1340 = vsub.f32 %v1255, 0.5
        %v1341 = vsub.f32 %v1256, 0.5
        %v1342 = vsub.f32 %v1257, 0.5
        %v1343 = vsub.f32 %v1258, 0.5
        %v1344 = vsub.f32 %v1259, 0.5
        %v1345 = vsub.f32 %v1260, 0.5
        %v1346 = vsub.f32 %v1261, 0.5
        %v1347 = vsub.f32 %v1262, 0.5
        %v1348 = vsub.f32 %v1263, 0.5
        %v1349 = vsub.f32 %v1264, 0.5
        %v1350 = vsub.f32 %v1265, 0.5
        %v1351 = vsub.f32 %v1266, 0.5
        %v1352 = vsub.f32 %v1267, 0.5
        %v1353 = vsub.f32 %v1268, 0.5
        %v1354 = vsub.f32 %v1269, 0.5
        %v1355 = vsub.f32 %v1270, 0.5
        %v1356 = vsub.f32 %v1271, 0.5
        %v1357 = vsub.f32 %v1272, 0.5
        %v1358 = vsub.f32 %v1273, 0.5
        %v1359 = vsub.f32 %v1274, 0.5
        %v1360 = vsub.f32 %v1275, 0.5
        %v1361 = vsub.f32 %v1276, 0.5
        %v1362 = vsub.f32 %v1277, 0.5
        %v1363 = vmul.f32 %v1331, %v1331
        %v1364 = vmul.f32 %v1332, %v1332
        %v1365 = vmul.f32 %v1333, %v1333
        %v1366 = vmul.f32 %v1334, %v1334
        %v1367 = vmul.f32 %v1335, %v1335
        %v1368 = vmul.f32 %v1336, %v1336
        %v1369 = vmul.f32 %v1337, %v1337
        %v1370 = vmul.f32 %v1338, %v1338
        %v1371 = vmul.f32 %v1339, %v1339
        %v1372 = vmul.f32 %v1340, %v1340
        %v1373 = vmul.f32 %v1341, %v1341
        %v1374 = vmul.f32 %v1342, %v1342
        %v1375 = vmul.f32 %v1343, %v1343
        %v1376 = vmul.f32 %v1344, %v1344
        %v1377 = vmul.f32 %v1345, %v1345
        %v1378 = vmul.f32 %v1346, %v1346
        %v1379 = vmul.f32 %v1347, %v1347
        %v1380 = vmul.f32 %v1348, %v1348
        %v1381 = vmul.f32 %v1349, %v1349
        %v1382 = vmul.f32 %v1350, %v1350
        %v1383 = vmul.f32 %v1351, %v1351
        %v1384 = vmul.f32 %v1352, %v1352
        %v1385 = vmul.f32 %v1353, %v1353
        %v1386 = vmul.f32 %v1354, %v1354
        %v1387 = vmul.f32 %v1355, %v1355
        %v1388 = vmul.f32 %v1356, %v1356
        %v1389 = vmul.f32 %v1357, %v1357
        %v1390 = vmul.f32 %v1358, %v1358
        %v1391 = vmul.f32 %v1359, %v1359
        %v1392 = vmul.f32 %v1360, %v1360
        %v1393 = vmul.f32 %v1361, %v1361
        %v1394 = vmul.f32 %v1362, %v1362
        %v1395 = vadd.f32 %v1363, %v1364
        %v1396 = vadd.f32 %v1395, %v1365
        %v1397 = vadd.f32 %v1396, %v1366
        %v1398 = vadd.f32 %v1397, %v1367
        %v1399 = vadd.f32 %v1398, %v1368
        %v1400 = vadd.f32 %v1399, %v1369
        %v1401 = vadd.f32 %v1400, %v1370
        %v1402 = vadd.f32 %v1401, %v1371
        %v1403 = vadd.f32 %v1402, %v1372
        %v1404 = vadd.f32 %v1403, %v1373
        %v1405 = vadd.f32 %v1404, %v1374
        %v1406 = vadd.f32 %v1405, %v1375
        %v1407 = vadd.f32 %v1406, %v1376
        %v1408 = vadd.f32 %v1407, %v1377
        %v1409 = vadd.f32 %v1408, %v1378
        %v1410 = vadd.f32 %v1409, %v1379
        %v1411 = vadd.f32 %v1410, %v1380
        %v1412 = vadd.f32 %v1411, %v1381
        %v1413 = vadd.f32 %v1412, %v1382
        %v1414 = vadd.f32 %v1413, %v1383
        %v1415 = vadd.f32 %v1414, %v1384
        %v1416 = vadd.f32 %v1415, %v1385
        %v1417 = vadd.f32 %v1416, %v1386
        %v1418 = vadd.f32 %v1417, %v1387
        %v1419 = vadd.f32 %v1418, %v1388
        %v1420 = vadd.f32 %v1419, %v1389
        %v1421 = vadd.f32 %v1420, %v1390
        %v1422 = vadd.f32 %v1421, %v1391
        %v1423 = vadd.f32 %v1422, %v1392
        %v1424 = vadd.f32 %v1423, %v1393
        %v1425 = vadd.f32 %v1424, %v1394
        %1426 = vadd.xlane.f32.xlu0 %v1425
        %v1427 = vpop.xlane.xlu0 %1426
        %v1428 = vrot.slane %v1427, 4
        %v1429 = vadd.f32 %v1427, %v1428
        %v1430 = vrot.slane %v1429, 2
        %v1431 = vadd.f32 %v1429, %v1430
        %v1432 = vrot.slane %v1431, 1
        %v1433 = vadd.f32 %v1431, %v1432
        %s1434 = vtos %v1433
        %s1435 = smul.f32 %s1434, -0.5
        %v1436 = vmul.f32 %v670, %v670
        %v1437 = vmul.f32 %v671, %v671
        %v1438 = vmul.f32 %v672, %v672
        %v1439 = vmul.f32 %v673, %v673
        %v1440 = vmul.f32 %v674, %v674
        %v1441 = vmul.f32 %v675, %v675
        %v1442 = vmul.f32 %v676, %v676
        %v1443 = vmul.f32 %v677, %v677
        %v1444 = vmul.f32 %v678, %v678
        %v1445 = vmul.f32 %v679, %v679
        %v1446 = vmul.f32 %v680, %v680
        %v1447 = vmul.f32 %v681, %v681
        %v1448 = vmul.f32 %v682, %v682
        %v1449 = vmul.f32 %v683, %v683
        %v1450 = vmul.f32 %v684, %v684
        %v1451 = vmul.f32 %v685, %v685
        %v1452 = vmul.f32 %v686, %v686
        %v1453 = vmul.f32 %v687, %v687
        %v1454 = vmul.f32 %v688, %v688
        %v1455 = vmul.f32 %v689, %v689
        %v1456 = vmul.f32 %v690, %v690
        %v1457 = vmul.f32 %v691, %v691
        %v1458 = vmul.f32 %v692, %v692
        %v1459 = vmul.f32 %v693, %v693
        %v1460 = vmul.f32 %v694, %v694
        %v1461 = vmul.f32 %v695, %v695
        %v1462 = vmul.f32 %v696, %v696
        %v1463 = vmul.f32 %v697, %v697
        %v1464 = vmul.f32 %v698, %v698
        %v1465 = vmul.f32 %v699, %v699
        %v1466 = vmul.f32 %v700, %v700
        %v1467 = vmul.f32 %v701, %v701
        %v1468 = vmul.f32 %v1436, -0.5
        %v1469 = vmul.f32 %v1437, -0.5
        %v1470 = vmul.f32 %v1438, -0.5
        %v1471 = vmul.f32 %v1439, -0.5
        %v1472 = vmul.f32 %v1440, -0.5
        %v1473 = vmul.f32 %v1441, -0.5
        %v1474 = vmul.f32 %v1442, -0.5
        %v1475 = vmul.f32 %v1443, -0.5
        %v1476 = vmul.f32 %v1444, -0.5
        %v1477 = vmul.f32 %v1445, -0.5
        %v1478 = vmul.f32 %v1446, -0.5
        %v1479 = vmul.f32 %v1447, -0.5
        %v1480 = vmul.f32 %v1448, -0.5
        %v1481 = vmul.f32 %v1449, -0.5
        %v1482 = vmul.f32 %v1450, -0.5
        %v1483 = vmul.f32 %v1451, -0.5
        %v1484 = vmul.f32 %v1452, -0.5
        %v1485 = vmul.f32 %v1453, -0.5
        %v1486 = vmul.f32 %v1454, -0.5
        %v1487 = vmul.f32 %v1455, -0.5
        %v1488 = vmul.f32 %v1456, -0.5
        %v1489 = vmul.f32 %v1457, -0.5
        %v1490 = vmul.f32 %v1458, -0.5
        %v1491 = vmul.f32 %v1459, -0.5
        %v1492 = vmul.f32 %v1460, -0.5
        %v1493 = vmul.f32 %v1461, -0.5
        %v1494 = vmul.f32 %v1462, -0.5
        %v1495 = vmul.f32 %v1463, -0.5
        %v1496 = vmul.f32 %v1464, -0.5
        %v1497 = vmul.f32 %v1465, -0.5
        %v1498 = vmul.f32 %v1466, -0.5
        %v1499 = vmul.f32 %v1467, -0.5
        %v1500 = vlog2.pop %v1182
        %v1501 = vmul.f32 %v1500, 0.6931472
        %v1502 = vlog2.pop %v1183
        %v1503 = vmul.f32 %v1502, 0.6931472
        %v1504 = vlog2.pop %v1184
        %v1505 = vmul.f32 %v1504, 0.6931472
        %v1506 = vlog2.pop %v1185
        %v1507 = vmul.f32 %v1506, 0.6931472
        %v1508 = vlog2.pop %v1186
        %v1509 = vmul.f32 %v1508, 0.6931472
        %v1510 = vlog2.pop %v1187
        %v1511 = vmul.f32 %v1510, 0.6931472
        %v1512 = vlog2.pop %v1188
        %v1513 = vmul.f32 %v1512, 0.6931472
        %v1514 = vlog2.pop %v1189
        %v1515 = vmul.f32 %v1514, 0.6931472
        %v1516 = vlog2.pop %v1190
        %v1517 = vmul.f32 %v1516, 0.6931472
        %v1518 = vlog2.pop %v1191
        %v1519 = vmul.f32 %v1518, 0.6931472
        %v1520 = vlog2.pop %v1192
        %v1521 = vmul.f32 %v1520, 0.6931472
        %v1522 = vlog2.pop %v1193
        %v1523 = vmul.f32 %v1522, 0.6931472
        %v1524 = vlog2.pop %v1194
        %v1525 = vmul.f32 %v1524, 0.6931472
        %v1526 = vlog2.pop %v1195
        %v1527 = vmul.f32 %v1526, 0.6931472
        %v1528 = vlog2.pop %v1196
        %v1529 = vmul.f32 %v1528, 0.6931472
        %v1530 = vlog2.pop %v1197
        %v1531 = vmul.f32 %v1530, 0.6931472
        %v1532 = vlog2.pop %v1198
        %v1533 = vmul.f32 %v1532, 0.6931472
        %v1534 = vlog2.pop %v1199
        %v1535 = vmul.f32 %v1534, 0.6931472
        %v1536 = vlog2.pop %v1200
        %v1537 = vmul.f32 %v1536, 0.6931472
        %v1538 = vlog2.pop %v1201
        %v1539 = vmul.f32 %v1538, 0.6931472
        %v1540 = vlog2.pop %v1202
        %v1541 = vmul.f32 %v1540, 0.6931472
        %v1542 = vlog2.pop %v1203
        %v1543 = vmul.f32 %v1542, 0.6931472
        %v1544 = vlog2.pop %v1204
        %v1545 = vmul.f32 %v1544, 0.6931472
        %v1546 = vlog2.pop %v1205
        %v1547 = vmul.f32 %v1546, 0.6931472
        %v1548 = vlog2.pop %v1206
        %v1549 = vmul.f32 %v1548, 0.6931472
        %v1550 = vlog2.pop %v1207
        %v1551 = vmul.f32 %v1550, 0.6931472
        %v1552 = vlog2.pop %v1208
        %v1553 = vmul.f32 %v1552, 0.6931472
        %v1554 = vlog2.pop %v1209
        %v1555 = vmul.f32 %v1554, 0.6931472
        %v1556 = vlog2.pop %v1210
        %v1557 = vmul.f32 %v1556, 0.6931472
        %v1558 = vlog2.pop %v1211
        %v1559 = vmul.f32 %v1558, 0.6931472
        %v1560 = vlog2.pop %v1212
        %v1561 = vmul.f32 %v1560, 0.6931472
        %v1562 = vlog2.pop %v1213
        %v1563 = vmul.f32 %v1562, 0.6931472
        %v1564 = vsub.f32 %v1468, %v1501
        %v1565 = vsub.f32 %v1469, %v1503
        %v1566 = vsub.f32 %v1470, %v1505
        %v1567 = vsub.f32 %v1471, %v1507
        %v1568 = vsub.f32 %v1472, %v1509
        %v1569 = vsub.f32 %v1473, %v1511
        %v1570 = vsub.f32 %v1474, %v1513
        %v1571 = vsub.f32 %v1475, %v1515
        %v1572 = vsub.f32 %v1476, %v1517
        %v1573 = vsub.f32 %v1477, %v1519
        %v1574 = vsub.f32 %v1478, %v1521
        %v1575 = vsub.f32 %v1479, %v1523
        %v1576 = vsub.f32 %v1480, %v1525
        %v1577 = vsub.f32 %v1481, %v1527
        %v1578 = vsub.f32 %v1482, %v1529
        %v1579 = vsub.f32 %v1483, %v1531
        %v1580 = vsub.f32 %v1484, %v1533
        %v1581 = vsub.f32 %v1485, %v1535
        %v1582 = vsub.f32 %v1486, %v1537
        %v1583 = vsub.f32 %v1487, %v1539
        %v1584 = vsub.f32 %v1488, %v1541
        %v1585 = vsub.f32 %v1489, %v1543
        %v1586 = vsub.f32 %v1490, %v1545
        %v1587 = vsub.f32 %v1491, %v1547
        %v1588 = vsub.f32 %v1492, %v1549
        %v1589 = vsub.f32 %v1493, %v1551
        %v1590 = vsub.f32 %v1494, %v1553
        %v1591 = vsub.f32 %v1495, %v1555
        %v1592 = vsub.f32 %v1496, %v1557
        %v1593 = vsub.f32 %v1497, %v1559
        %v1594 = vsub.f32 %v1498, %v1561
        %v1595 = vsub.f32 %v1499, %v1563
        %v1596 = vadd.f32 %v1564, %v1565
        %v1597 = vadd.f32 %v1596, %v1566
        %v1598 = vadd.f32 %v1597, %v1567
        %v1599 = vadd.f32 %v1598, %v1568
        %v1600 = vadd.f32 %v1599, %v1569
        %v1601 = vadd.f32 %v1600, %v1570
        %v1602 = vadd.f32 %v1601, %v1571
        %v1603 = vadd.f32 %v1602, %v1572
        %v1604 = vadd.f32 %v1603, %v1573
        %v1605 = vadd.f32 %v1604, %v1574
        %v1606 = vadd.f32 %v1605, %v1575
        %v1607 = vadd.f32 %v1606, %v1576
        %v1608 = vadd.f32 %v1607, %v1577
        %v1609 = vadd.f32 %v1608, %v1578
        %v1610 = vadd.f32 %v1609, %v1579
        %v1611 = vadd.f32 %v1610, %v1580
        %v1612 = vadd.f32 %v1611, %v1581
        %v1613 = vadd.f32 %v1612, %v1582
        %v1614 = vadd.f32 %v1613, %v1583
        %v1615 = vadd.f32 %v1614, %v1584
        %v1616 = vadd.f32 %v1615, %v1585
        %v1617 = vadd.f32 %v1616, %v1586
        %v1618 = vadd.f32 %v1617, %v1587
        %v1619 = vadd.f32 %v1618, %v1588
        %v1620 = vadd.f32 %v1619, %v1589
        %v1621 = vadd.f32 %v1620, %v1590
        %v1622 = vadd.f32 %v1621, %v1591
        %v1623 = vadd.f32 %v1622, %v1592
        %v1624 = vadd.f32 %v1623, %v1593
        %v1625 = vadd.f32 %v1624, %v1594
        %v1626 = vadd.f32 %v1625, %v1595
        %1627 = vadd.xlane.f32.xlu0 %v1626
        %v1628 = vpop.xlane.xlu0 %1627
        %v1629 = vrot.slane %v1628, 4
        %v1630 = vadd.f32 %v1628, %v1629
        %v1631 = vrot.slane %v1630, 2
        %v1632 = vadd.f32 %v1630, %v1631
        %v1633 = vrot.slane %v1632, 1
        %v1634 = vadd.f32 %v1632, %v1633
        %s1635 = vtos %v1634
        %v1636 = vsub.f32 %v1329, 0.5
        %v1637 = vmul.f32 %v1636, %v1636
        %vm1638 = vcmask 1040384
        %v1639 = vsel %vm1638, %v1637, 0.0
        %1640 = vadd.xlane.f32.xlu0 %v1639
        %v1641 = vpop.xlane.xlu0 %1640
        %v1642 = vrot.slane %v1641, 4
        %v1643 = vadd.f32 %v1641, %v1642
        %v1644 = vrot.slane %v1643, 2
        %v1645 = vadd.f32 %v1643, %v1644
        %v1646 = vrot.slane %v1645, 1
        %v1647 = vadd.f32 %v1645, %v1646
        %s1648 = vtos %v1647
        %s1649 = smul.f32 %s1648, -0.5
        %v1650 = vmul.f32 %v1311, %v1311
        %v1651 = vmul.f32 %v1650, -0.5
        %v1652 = vlog2.pop %v1327
        %v1653 = vmul.f32 %v1652, 0.6931472
        %v1654 = vsub.f32 %v1651, %v1653
        %v1655 = vsel %vm1638, %v1654, 0.0
        %1656 = vadd.xlane.f32.xlu0 %v1655
        %v1657 = vpop.xlane.xlu0 %1656
        %v1658 = vrot.slane %v1657, 4
        %v1659 = vadd.f32 %v1657, %v1658
        %v1660 = vrot.slane %v1659, 2
        %v1661 = vadd.f32 %v1659, %v1660
        %v1662 = vrot.slane %v1661, 1
        %v1663 = vadd.f32 %v1661, %v1662
        %s1664 = vtos %v1663
        %p1665 = scmp.eq.s32.totalorder %s44, 0
        %s1666 = scalar_select %p1665, 1, 0
        %s1667 = scvt.s32.f32 %s1666
        %s1668 = ssub.f32 %s1435, 30111.777
        %s1669 = ssub.f32 %s1649, 117.62413
        %s1670 = smul.f32 %s1667, %s1669
        %s1671 = sadd.f32 %s1668, %s1670
        %s1672 = ssub.f32 %s1635, 30111.777
        %s1673 = ssub.f32 %s1664, 117.62413
        %s1674 = smul.f32 %s1667, %s1673
        %s1675 = sadd.f32 %s1672, %s1674
        %p1676 = scmp.eq.s32.totalorder %s43, 0
        %p1677 = pnand %p1676, %p1665
        %p1678 = pneg %p1677
        // Predicated region
        $region69: #{tpu_custom_call.1} parent=47 // pred_check
          _
        $region70: #{tpu_custom_call.1} parent=47 // pred_check_branch
          %1680 = sbr.rel (%p1677) target = $region72
        $region71: #{tpu_custom_call.1} parent=47 // pred_region
          %vm1681 = vcmask 0
          %1682 = vst.msk [vmem:[#allocation15] sm:$0x1] %vm1681, 0.0
          %1683 = vst.msk [vmem:[#allocation17] sm:$0x1] %vm1681, 0.0
        $region72: #{tpu_custom_call.1} parent=47 // pred_fallthru
          _
        %v1684 = vld [vmem:[#allocation15] sm:$0x1]
        %v1685 = vstv %s1671
        %v1686 = vadd.f32 %v1684, %v1685
        %vm1687 = vcmask 0
        %1688 = vst.msk [vmem:[#allocation15] sm:$0x1] %vm1687, %v1686
        %v1689 = vld [vmem:[#allocation17] sm:$0x1]
        %v1690 = vstv %s1675
        %v1691 = vadd.f32 %v1689, %v1690
        %1692 = vst.msk [vmem:[#allocation17] sm:$0x1] %vm1687, %v1691
        // Predicated region
        $region73: #{tpu_custom_call.1} parent=47 // pred_check
          %p1693 = pneg %p1665
        $region74: #{tpu_custom_call.1} parent=47 // pred_check_branch
          %1695 = sbr.rel (%p1693) target = $region76
        $region75: #{tpu_custom_call.1} parent=47 // pred_region
          %v1697 = vperm.slane %v1329, 0
          %1699 = vst [vmem:[%s618] sm:$0xff] %v1697
        $region76: #{tpu_custom_call.1} parent=47 // pred_fallthru
          _
        %v1700 = vld [vmem:[%s618] sm:$0xff]
        %v1701 = vld [vmem:[%s549] sm:$0xff]
        %v1702 = vld [vmem:[%s549 + $0x8] sm:$0xff]
        %1703 = vmatpush.xpose.msra.mxu0 %v1276
        %1704 = vmatpush.xpose.msra.mxu0 %v1274
        %1705 = vmatpush.xpose.msra.mxu0 %v1272
        %1706 = vmatpush.xpose.msra.mxu0 %v1270
        %1707 = vmatpush.xpose.msra.mxu0 %v1268
        %1708 = vmatpush.xpose.msra.mxu0 %v1266
        %1709 = vmatpush.xpose.msra.mxu0 %v1264
        %1710 = vmatpush.xpose.msra.mxu0 %v1262
        %1711 = vmatpush.xpose.msra.mxu0 %v1260
        %1712 = vmatpush.xpose.msra.mxu0 %v1258
        %1713 = vmatpush.xpose.msra.mxu0 %v1256
        %1714 = vmatpush.xpose.msra.mxu0 %v1254
        %1715 = vmatpush.xpose.msra.mxu0 %v1252
        %1716 = vmatpush.xpose.msra.mxu0 %v1250
        %1717 = vmatpush.xpose.msra.mxu0 %v1248
        %1718 = vmatpush.xpose.msra.mxu0 %v1246
        %1719 = vmatmul.f32.gmra.mxu0 %v1701
        %v1720 = vpop.f32.mrf.mxu0
        %v1721 = vadd.f32 0.0, %v1720
        %1722 = vdwg.mxu0
        %1723 = vmatpush.xpose.msra.mxu0 %v1277
        %1724 = vmatpush.xpose.msra.mxu0 %v1275
        %1725 = vmatpush.xpose.msra.mxu0 %v1273
        %1726 = vmatpush.xpose.msra.mxu0 %v1271
        %1727 = vmatpush.xpose.msra.mxu0 %v1269
        %1728 = vmatpush.xpose.msra.mxu0 %v1267
        %1729 = vmatpush.xpose.msra.mxu0 %v1265
        %1730 = vmatpush.xpose.msra.mxu0 %v1263
        %1731 = vmatpush.xpose.msra.mxu0 %v1261
        %1732 = vmatpush.xpose.msra.mxu0 %v1259
        %1733 = vmatpush.xpose.msra.mxu0 %v1257
        %1734 = vmatpush.xpose.msra.mxu0 %v1255
        %1735 = vmatpush.xpose.msra.mxu0 %v1253
        %1736 = vmatpush.xpose.msra.mxu0 %v1251
        %1737 = vmatpush.xpose.msra.mxu0 %v1249
        %1738 = vmatpush.xpose.msra.mxu0 %v1247
        %1739 = vmatmul.f32.gmra.mxu0 %v1702
        %v1740 = vpop.f32.mrf.mxu0
        %v1741 = vadd.f32 %v1721, %v1740
        %1742 = vdwg.mxu0
        %v1743 = vadd.f32 %v1700, %v1741
        %1744 = vst [vmem:[%s618] sm:$0xff] %v1743
        %s1745 = sand.u32 %s249, 1
        %s1746 = scalar_lea.sflag [#allocation4], %s1745
        %s1747 = sand.u32 %s249, 1
        %s1748 = smul.addr %s1747, 256
        %s1749 = scalar_lea.vmem [#allocation11], %s1748
        %s1750 = sand.u32 %s39, 1
        %s1751 = scalar_lea.sflag [#allocation13], %s1750
        %s1752 = sand.u32 %s275, 1
        %s1753 = scalar_lea.vmem [#allocation12], %s1752
        %s1754 = sand.u32 %s39, 1
        %s1755 = scalar_lea.sflag [#allocation13], %s1754
        %s1756 = sand.u32 %s301, 1
        %s1757 = smul.addr %s1756, 8
        %s1758 = scalar_lea.vmem [#allocation14], %s1757
        // Predicated region
        $region77: #{tpu_custom_call.1} parent=47 // pred_check
          %p1759 = pneg %p259
        $region78: #{tpu_custom_call.1} parent=47 // pred_check_branch
          %1761 = sbr.rel (%p1759) target = $region80
        $region79: #{tpu_custom_call.1} parent=47 // pred_region
          %s1762 = smul.u32 16, %s43
          %s1763 = smul.u32 2, %s44
          %1765 = vsyncadd %s1746, 0
          %s1766 = smul.addr %s1762, 4
          %s1767 = sadd.s32 %s1763, %s1766
          %s1768 = smul.addr %s1767, 8
          %s1769 = scalar_lea.hbm %s7, %s1768
          %s1770 = sshll.u32 %s1749, 4
          %s1771 = int_to_ptr.vmem [resolvable:$true] %s1770
          %s1772 = sshll.u32 %s1769, 4
          %s1773 = int_to_ptr.hbm [resolvable:$true] %s1772
          %1778 = dma.vmem_to_hbm [thread:$0]  %s1771, 4096, %s1773, %s1746, 256, 512, 16
        $region80: #{tpu_custom_call.1} parent=47 // pred_fallthru
          _
        // Predicated region
        $region81: #{tpu_custom_call.1} parent=47 // pred_check
          %p1779 = pneg %p285
        $region82: #{tpu_custom_call.1} parent=47 // pred_check_branch
          %1781 = sbr.rel (%p1779) target = $region84
        $region83: #{tpu_custom_call.1} parent=47 // pred_region
          %1783 = vsyncadd %s1751, 0
          %s1784 = scalar_lea.hbm %s8, %s43
          %s1786 = sshll.u32 %s1753, 4
          %s1787 = int_to_ptr.vmem [resolvable:$true] %s1786
          %s1788 = sshll.u32 %s1784, 4
          %s1789 = int_to_ptr.hbm [resolvable:$true] %s1788
          %1791 = dma.vmem_to_hbm [thread:$0]  %s1787, 16, %s1789, %s1751
        $region84: #{tpu_custom_call.1} parent=47 // pred_fallthru
          _
        // Predicated region
        $region85: #{tpu_custom_call.1} parent=47 // pred_check
          %p1792 = pneg %p311
        $region86: #{tpu_custom_call.1} parent=47 // pred_check_branch
          %1794 = sbr.rel (%p1792) target = $region88
        $region87: #{tpu_custom_call.1} parent=47 // pred_region
          %1796 = vsyncadd %s1755, 0
          %s1797 = smul.addr %s43, 8
          %s1798 = scalar_lea.hbm %s9, %s1797
          %s1800 = sshll.u32 %s1758, 4
          %s1801 = int_to_ptr.vmem [resolvable:$true] %s1800
          %s1802 = sshll.u32 %s1798, 4
          %s1803 = int_to_ptr.hbm [resolvable:$true] %s1802
          %1805 = dma.vmem_to_hbm [thread:$0]  %s1801, 128, %s1803, %s1755
        $region88: #{tpu_custom_call.1} parent=47 // pred_fallthru
          _
        // Predicated region
        $region89: #{tpu_custom_call.1} parent=47 // pred_check
          %p1806 = pneg %p332
        $region90: #{tpu_custom_call.1} parent=47 // pred_check_branch
          %1808 = sbr.rel (%p1806) target = $region92
        $region91: #{tpu_custom_call.1} parent=47 // pred_region
          %1810 = vsyncadd [#allocation16], 0
          %s1812 = sshll.u32 [#allocation15], 4
          %s1813 = int_to_ptr.vmem [resolvable:$true] %s1812
          %s1814 = sshll.u32 %s10, 4
          %s1815 = int_to_ptr.hbm [resolvable:$true] %s1814
          %1817 = dma.vmem_to_hbm [thread:$0]  %s1813, 16, %s1815, [#allocation16]
        $region92: #{tpu_custom_call.1} parent=47 // pred_fallthru
          _
        // Predicated region
        $region93: #{tpu_custom_call.1} parent=47 // pred_check
          %p1818 = pneg %p353
        $region94: #{tpu_custom_call.1} parent=47 // pred_check_branch
          %1820 = sbr.rel (%p1818) target = $region96
        $region95: #{tpu_custom_call.1} parent=47 // pred_region
          %1822 = vsyncadd [#allocation16], 0
          %s1824 = sshll.u32 [#allocation17], 4
          %s1825 = int_to_ptr.vmem [resolvable:$true] %s1824
          %s1826 = sshll.u32 %s11, 4
          %s1827 = int_to_ptr.hbm [resolvable:$true] %s1826
          %1829 = dma.vmem_to_hbm [thread:$0]  %s1825, 16, %s1827, [#allocation16]
        $region96: #{tpu_custom_call.1} parent=47 // pred_fallthru
          _
        // Predicated region
        $region97: #{tpu_custom_call.1} parent=47 // pred_check
          %p1830 = pneg %p332
        $region98: #{tpu_custom_call.1} parent=47 // pred_check_branch
          %1832 = sbr.rel (%p1830) target = $region100
        $region99: #{tpu_custom_call.1} parent=47 // pred_region
          %1834 = dma.done [#allocation16], 16
        $region100: #{tpu_custom_call.1} parent=47 // pred_fallthru
          _
        // Predicated region
        $region101: #{tpu_custom_call.1} parent=47 // pred_check
          %p1835 = pneg %p353
        $region102: #{tpu_custom_call.1} parent=47 // pred_check_branch
          %1837 = sbr.rel (%p1835) target = $region104
        $region103: #{tpu_custom_call.1} parent=47 // pred_region
          %1839 = dma.done [#allocation16], 16
        $region104: #{tpu_custom_call.1} parent=47 // pred_fallthru
          _
      $region48: #{tpu_custom_call.1} parent=5 // pred_fallthru
        _
      %p1840 = scmp.le.s32.totalorder 2, %s34
      // Predicated region
      $region105: #{tpu_custom_call.1} parent=5 // pred_check
        %p1841 = pneg %p1840
      $region106: #{tpu_custom_call.1} parent=5 // pred_check_branch
        %1843 = sbr.rel (%p1841) target = $region108
      $region107: #{tpu_custom_call.1} parent=5 // pred_region
        %s1844 = ssub.s32 %s34, 2
        // Predicated region
        $region109: #{tpu_custom_call.1} parent=107 // pred_check
          %p1845 = pneg %p265
        $region110: #{tpu_custom_call.1} parent=107 // pred_check_branch
          %1847 = sbr.rel (%p1845) target = $region112
        $region111: #{tpu_custom_call.1} parent=107 // pred_region
          %s1848 = sand.u32 %s250, 1
          %s1849 = scalar_lea.sflag [#allocation4], %s1848
          %s1850 = sand.u32 %s250, 1
          %s1851 = smul.addr %s1850, 256
          %s1852 = scalar_lea.vmem [#allocation11], %s1851
          %1854 = dma.done %s1849, 4096
        $region112: #{tpu_custom_call.1} parent=107 // pred_fallthru
          _
        // Predicated region
        $region113: #{tpu_custom_call.1} parent=107 // pred_check
          %p1855 = pneg %p291
        $region114: #{tpu_custom_call.1} parent=107 // pred_check_branch
          %1857 = sbr.rel (%p1855) target = $region116
        $region115: #{tpu_custom_call.1} parent=107 // pred_region
          %s1858 = sand.u32 %s40, 1
          %s1859 = scalar_lea.sflag [#allocation13], %s1858
          %s1860 = sand.u32 %s276, 1
          %s1861 = scalar_lea.vmem [#allocation12], %s1860
          %1863 = dma.done %s1859, 16
        $region116: #{tpu_custom_call.1} parent=107 // pred_fallthru
          _
        // Predicated region
        $region117: #{tpu_custom_call.1} parent=107 // pred_check
          %p1864 = pneg %p317
        $region118: #{tpu_custom_call.1} parent=107 // pred_check_branch
          %1866 = sbr.rel (%p1864) target = $region120
        $region119: #{tpu_custom_call.1} parent=107 // pred_region
          %s1867 = sand.u32 %s40, 1
          %s1868 = scalar_lea.sflag [#allocation13], %s1867
          %s1869 = sand.u32 %s302, 1
          %s1870 = smul.addr %s1869, 8
          %s1871 = scalar_lea.vmem [#allocation14], %s1870
          %1873 = dma.done %s1868, 128
        $region120: #{tpu_custom_call.1} parent=107 // pred_fallthru
          _
      $region108: #{tpu_custom_call.1} parent=5 // pred_fallthru
        _
    $region6: #{tpu_custom_call.1} parent=1 // loop_footer
      %s38 = sadd.s32 1, %s34
    $region7: #{tpu_custom_call.1} parent=1 // loop_footer_branch
      %33 = sbr.rel target = $region3
    $region8: #{tpu_custom_call.1} parent=1 // loop_exit
      _
    %1874 = vsyncpa [#allocation3], 1
    %s1875 = scalar_lea.sflag [#allocation3], 1
    %1876 = vsyncpa %s1875, 1
    %1877 = vsyncpa [#allocation6], 1
    %s1878 = scalar_lea.sflag [#allocation6], 1
    %1879 = vsyncpa %s1878, 1
    %1880 = vsyncpa [#allocation9], 1
    %s1881 = scalar_lea.sflag [#allocation9], 1
    %1882 = vsyncpa %s1881, 1
    %1883 = vsyncpa [#allocation4], 1
    %s1884 = scalar_lea.sflag [#allocation4], 1
    %1885 = vsyncpa %s1884, 1
    %1886 = vsyncpa [#allocation13], 1
    %s1887 = scalar_lea.sflag [#allocation13], 1
    %1888 = vsyncpa %s1887, 1
    %1889 = vsyncpa [#allocation16], 1

</llo_original>
